<compile_context>
chip_gen: v7x
topology: tpu7x:2x2x1
jax: 0.10.0
libtpu: 0.0.40
codegen_flags: <defaults>
</compile_context>

<pallas_src>
import functools

import jax
import jax.numpy as jnp
from jax import lax
from jax.experimental import pallas as pl
from jax.experimental.pallas import tpu as pltpu


def _round_up(x, m):
    return ((x + m - 1) // m) * m


def _vmem_capacity_bytes():
    """Physical VMEM per core; conservative fallback if the query fails."""
    try:
        cap = int(pltpu.get_tpu_info().vmem_capacity_bytes)
        if cap > 0:
            return cap
    except Exception:
        pass
    return 64 << 20  # v7x per-TC capacity: safe lower bound for all gens.


# ---------------------------------------------------------------------------
# Fused kernel: one grid step per block of LB layers (layer axis sequential).
# ---------------------------------------------------------------------------
def _encoder_gru_kernel(x_ref, w_emb_ref, b_emb_ref, h0_ref,
                        w_ih_ref, w_hh_ref, b_ref, h_out_ref, xbuf_ref):
    Hp = h0_ref.shape[-1]
    LB = h0_ref.shape[0]

    # Grid step 0: Linear embedding -> becomes GRU layer-0 input, carried in
    # bf16 VMEM scratch.  w_emb has a constant index_map so it is DMA'd once.
    @pl.when(pl.program_id(0) == 0)
    def _():
        emb = jnp.dot(x_ref[...].astype(jnp.bfloat16), w_emb_ref[...],
                      preferred_element_type=jnp.float32) + b_emb_ref[...]
        xbuf_ref[...] = emb.astype(jnp.bfloat16)

    def layer_body(i, carry):
        x = xbuf_ref[...]                          # (Bp, Hp) bf16
        h = h0_ref[i]                              # (Bp, Hp) f32
        bias = b_ref[i]                            # (2, 3Hp) f32: [b_ih; b_hh]

        # MXU matmuls: bf16 operands, f32 accumulation; gate math stays f32
        # (v5e has no bf16 VPU/EUP).
        gi = jnp.dot(x, w_ih_ref[i],
                     preferred_element_type=jnp.float32) + bias[0:1]
        gh = jnp.dot(h.astype(jnp.bfloat16), w_hh_ref[i],
                     preferred_element_type=jnp.float32) + bias[1:2]

        # PyTorch GRU gate order: r, z, n.  Hp is a multiple of 128 so the
        # gate slices are lane-tile aligned (no relayout, unmasked stores).
        r = jax.nn.sigmoid(gi[:, 0:Hp] + gh[:, 0:Hp])
        z = jax.nn.sigmoid(gi[:, Hp:2 * Hp] + gh[:, Hp:2 * Hp])
        n = jnp.tanh(gi[:, 2 * Hp:3 * Hp] + r * gh[:, 2 * Hp:3 * Hp])
        h_new = (1.0 - z) * n + z * h              # (Bp, Hp) f32

        h_out_ref[i] = h_new                       # this layer's new hidden
        xbuf_ref[...] = h_new.astype(jnp.bfloat16)  # feed the next layer
        return carry

    lax.fori_loop(0, LB, layer_body, 0, unroll=True)


# ---------------------------------------------------------------------------
# One-time weight packing (hoisted out of the per-step forward).
# ---------------------------------------------------------------------------
def prepare_params(params, n_layers, hidden_size, input_size):
    H, I = hidden_size, input_size
    Hp = _round_up(H, 128)
    Ip = _round_up(I, 128)

    def pad_gate_cols(a):
        if Hp == H:
            return a
        pad = [(0, 0)] * (a.ndim - 1) + [(0, Hp - H)]
        return jnp.concatenate(
            [jnp.pad(a[..., g * H:(g + 1) * H], pad) for g in range(3)],
            axis=-1)

    def pad_rows(a, rows_to):
        r = a.shape[0]
        return a if rows_to == r else jnp.pad(a, ((0, rows_to - r), (0, 0)))

    w_emb = pad_rows(jnp.pad(params["w_emb"], ((0, 0), (0, Hp - H))), Ip)
    b_emb = jnp.pad(params["b_emb"], ((0, 0), (0, Hp - H)))

    w_ih = jnp.stack([pad_rows(pad_gate_cols(params[f"w_ih_l{l}"]), Hp)
                      for l in range(n_layers)])
    w_hh = jnp.stack([pad_rows(pad_gate_cols(params[f"w_hh_l{l}"]), Hp)
                      for l in range(n_layers)])
    b = jnp.stack([jnp.concatenate(
        [pad_gate_cols(params[f"b_ih_l{l}"]),
         pad_gate_cols(params[f"b_hh_l{l}"])], axis=0)
        for l in range(n_layers)])

    return {
        "w_emb": w_emb.astype(jnp.bfloat16),   # (Ip, Hp)
        "b_emb": b_emb.astype(jnp.float32),    # (1, Hp)
        "w_ih": w_ih.astype(jnp.bfloat16),     # (L, Hp, 3Hp)
        "w_hh": w_hh.astype(jnp.bfloat16),     # (L, Hp, 3Hp)
        "b": b.astype(jnp.float32),            # (L, 2, 3Hp)
    }


# ---------------------------------------------------------------------------
# Wrapper: mirrors EncoderRNN.forward -> (output (1,B,H), hidden (L,B,H)).
# ---------------------------------------------------------------------------
@jax.jit
def encoder_rnn_forward(x, hidden, packed):
    B, I = x.shape
    n_layers, _, H = hidden.shape
    Ip, Hp = packed["w_emb"].shape
    Bp = _round_up(B, 8)

    x_pad = jnp.zeros((Bp, Ip), jnp.float32).at[:B, :I].set(x)
    h_pad = jnp.zeros((n_layers, Bp, Hp), jnp.float32).at[:, :B, :H].set(hidden)

    # Small-model regime: all layers resident in one grid step + unrolled
    # in-kernel layer loop.  Otherwise one layer per grid step (prefetch).
    bf16b, f32b = 2, 4
    total_w_bytes = (2 * n_layers * Hp * 3 * Hp + Ip * Hp) * bf16b
    LB = n_layers if total_w_bytes <= (12 << 20) else 1
    n_blocks = n_layers // LB

    step_in_bytes = (LB * Bp * Hp * f32b
                     + 2 * LB * Hp * 3 * Hp * bf16b
                     + LB * 2 * 3 * Hp * f32b)
    step_out_bytes = LB * Bp * Hp * f32b
    const_bytes = Bp * Ip * f32b + Ip * Hp * bf16b + Hp * f32b
    vmem_need = (2 * (step_in_bytes + step_out_bytes + const_bytes)
                 + Bp * Hp * bf16b + (4 << 20))
    cap = _vmem_capacity_bytes()
    vmem_limit = int(max(16 << 20, min(vmem_need, cap - (12 << 20))))

    cost = pl.CostEstimate(
        flops=(2 * Bp * Ip * Hp
               + n_layers * (4 * Bp * Hp * 3 * Hp + 12 * Bp * Hp)),
        transcendentals=3 * n_layers * Bp * Hp,
        bytes_accessed=((packed["w_emb"].size + packed["w_ih"].size
                         + packed["w_hh"].size) * bf16b
                        + (packed["b_emb"].size + packed["b"].size
                           + x_pad.size + 2 * h_pad.size) * f32b),
    )

    h_new_pad = pl.pallas_call(
        _encoder_gru_kernel,
        out_shape=jax.ShapeDtypeStruct((n_layers, Bp, Hp), jnp.float32),
        grid_spec=pltpu.PrefetchScalarGridSpec(
            num_scalar_prefetch=0,
            grid=(n_blocks,),
            in_specs=[
                pl.BlockSpec((Bp, Ip), lambda g: (0, 0)),             # x
                pl.BlockSpec((Ip, Hp), lambda g: (0, 0)),             # w_emb
                pl.BlockSpec((1, Hp), lambda g: (0, 0)),              # b_emb
                pl.BlockSpec((LB, Bp, Hp), lambda g: (g, 0, 0)),      # hidden
                pl.BlockSpec((LB, Hp, 3 * Hp), lambda g: (g, 0, 0)),  # w_ih
                pl.BlockSpec((LB, Hp, 3 * Hp), lambda g: (g, 0, 0)),  # w_hh
                pl.BlockSpec((LB, 2, 3 * Hp), lambda g: (g, 0, 0)),   # biases
            ],
            out_specs=pl.BlockSpec((LB, Bp, Hp), lambda g: (g, 0, 0)),
            scratch_shapes=[pltpu.VMEM((Bp, Hp), jnp.bfloat16)],      # xbuf
        ),
        compiler_params=pltpu.CompilerParams(
            # Layer axis carries a true sequential dependency via scratch.
            dimension_semantics=("arbitrary",),
            vmem_limit_bytes=vmem_limit,
        ),
        cost_estimate=cost,
    )(x_pad, packed["w_emb"], packed["b_emb"], h_pad,
      packed["w_ih"], packed["w_hh"], packed["b"])

    new_hidden = h_new_pad[:, :B, :H]                 # (L, B, H)
    output = new_hidden[n_layers - 1][None]           # seq_len == 1 -> (1,B,H)
    return output, new_hidden


# ---------------------------------------------------------------------------
# Params (stored as (in, out) so kernels compute x @ W; biases as (1, out)).
# ---------------------------------------------------------------------------
def init_params(key, input_size, hidden_size, n_layers=1):
    params = {}
    k = key

    def u(kk, shape, bound):
        return jax.random.uniform(kk, shape, jnp.float32, -bound, bound)

    # nn.Linear(input_size, hidden_size)
    k, k1, k2 = jax.random.split(k, 3)
    e_bound = 1.0 / (input_size ** 0.5)
    params["w_emb"] = u(k1, (input_size, hidden_size), e_bound)
    params["b_emb"] = u(k2, (1, hidden_size), e_bound)

    # nn.GRU(hidden_size, hidden_size, n_layers)
    g_bound = 1.0 / (hidden_size ** 0.5)
    for l in range(n_layers):
        k, k1, k2, k3, k4 = jax.random.split(k, 5)
        params[f"w_ih_l{l}"] = u(k1, (hidden_size, 3 * hidden_size), g_bound)
        params[f"w_hh_l{l}"] = u(k2, (hidden_size, 3 * hidden_size), g_bound)
        params[f"b_ih_l{l}"] = u(k3, (1, 3 * hidden_size), g_bound)
        params[f"b_hh_l{l}"] = u(k4, (1, 3 * hidden_size), g_bound)
    return params


def _reference_forward(x, hidden, params, n_layers=1):
    """Pure-f32 jnp reference for correctness check."""
    H = hidden.shape[-1]
    layer_in = x @ params["w_emb"] + params["b_emb"]
    hs = []
    for l in range(n_layers):
        h = hidden[l]
        gi = layer_in @ params[f"w_ih_l{l}"] + params[f"b_ih_l{l}"]
        gh = h @ params[f"w_hh_l{l}"] + params[f"b_hh_l{l}"]
        r = jax.nn.sigmoid(gi[:, :H] + gh[:, :H])
        z = jax.nn.sigmoid(gi[:, H:2 * H] + gh[:, H:2 * H])
        n = jnp.tanh(gi[:, 2 * H:] + r * gh[:, 2 * H:])
        h_new = (1.0 - z) * n + z * h
        hs.append(h_new)
        layer_in = h_new
    return layer_in[None], jnp.stack(hs, 0)


if __name__ == "__main__":
    input_size = 16
    hidden_size = 32
    batch = 2
    n_layers = 2

    key = jax.random.PRNGKey(0)
    k_params, k_x = jax.random.split(key)
    params = init_params(k_params, input_size, hidden_size, n_layers)

    # One-time weight packing (hoisted out of the per-step forward pass).
    packed = prepare_params(params, n_layers, hidden_size, input_size)
    packed = jax.tree_util.tree_map(jax.block_until_ready, packed)

    x = jax.random.normal(k_x, (batch, input_size), jnp.float32)
    hidden = jnp.zeros((n_layers, batch, hidden_size), jnp.float32)  # initHidden()

    output, new_hidden = encoder_rnn_forward(x, hidden, packed)
    output = jax.block_until_ready(output)
    new_hidden = jax.block_until_ready(new_hidden)

    ref_out, ref_hid = _reference_forward(x, hidden, params, n_layers)
    assert output.shape == (1, batch, hidden_size)
    assert new_hidden.shape == (n_layers, batch, hidden_size)
    # bf16 MXU weight operands (f32 accumulation / gate math) -> loose-ish tol.
    assert jnp.allclose(output, ref_out, atol=2e-2, rtol=2e-2), \
        float(jnp.max(jnp.abs(output - ref_out)))
    assert jnp.allclose(new_hidden, ref_hid, atol=2e-2, rtol=2e-2), \
        float(jnp.max(jnp.abs(new_hidden - ref_hid)))

    print("KERNEL_OK")
</pallas_src>

<mosaic_0001>
module attributes {stable_mosaic.version = 11 : i64} {
  func.func @_encoder_gru_kernel(%arg0: i32, %arg1: memref<8x128xf32, #tpu.memory_space<vmem>>, %arg2: memref<128x128xbf16, #tpu.memory_space<vmem>>, %arg3: memref<1x128xf32, #tpu.memory_space<vmem>>, %arg4: memref<2x8x128xf32, #tpu.memory_space<vmem>>, %arg5: memref<2x128x384xbf16, #tpu.memory_space<vmem>>, %arg6: memref<2x128x384xbf16, #tpu.memory_space<vmem>>, %arg7: memref<2x2x384xf32, #tpu.memory_space<vmem>>, %arg8: memref<2x8x128xf32, #tpu.memory_space<vmem>>, %arg9: memref<8x128xbf16, #tpu.memory_space<vmem>>) attributes {dimension_semantics = [#tpu.dimension_semantics<arbitrary>], iteration_bounds = array<i64: 1>, scalar_prefetch = 0 : i64, scratch_operands = 1 : i64, tpu.core_type = #tpu.core_type<tc>, window_params = [{pipeline_mode = #tpu.pipeline_mode<synchronous>, transform_indices = @transform_0, window_bounds = array<i64: 8, 128>}, {pipeline_mode = #tpu.pipeline_mode<synchronous>, transform_indices = @transform_1, window_bounds = array<i64: 128, 128>}, {pipeline_mode = #tpu.pipeline_mode<synchronous>, transform_indices = @transform_2, window_bounds = array<i64: 1, 128>}, {transform_indices = @transform_3, window_bounds = array<i64: 2, 8, 128>}, {transform_indices = @transform_4, window_bounds = array<i64: 2, 128, 384>}, {transform_indices = @transform_5, window_bounds = array<i64: 2, 128, 384>}, {transform_indices = @transform_6, window_bounds = array<i64: 2, 2, 384>}, {transform_indices = @transform_7, window_bounds = array<i64: 2, 8, 128>}]} {
    %c0_i32 = arith.constant 0 : i32
    %0 = arith.cmpi eq, %arg0, %c0_i32 : i32
    %1 = arith.extui %0 : i1 to i32
    %c0_i32_0 = arith.constant 0 : i32
    %2 = arith.cmpi ne, %1, %c0_i32_0 : i32
    scf.if %2 {
      %c0_38 = arith.constant 0 : index
      %c0_39 = arith.constant 0 : index
      %111 = vector.load %arg1[%c0_38, %c0_39] : memref<8x128xf32, #tpu.memory_space<vmem>>, vector<8x128xf32>
      %112 = arith.truncf %111 : vector<8x128xf32> to vector<8x128xbf16>
      %c0_40 = arith.constant 0 : index
      %c0_41 = arith.constant 0 : index
      %113 = vector.load %arg2[%c0_40, %c0_41] : memref<128x128xbf16, #tpu.memory_space<vmem>>, vector<128x128xbf16>
      %cst_42 = arith.constant dense<0.000000e+00> : vector<8x128xf32>
      %114 = tpu.matmul %112, %113, %cst_42 {dimension_numbers = #tpu.dot_dimension_numbers<[1], [0], [0], [1], [0, 0, 1, 1], [], []>} : vector<8x128xbf16>, vector<128x128xbf16>, vector<8x128xf32> -> vector<8x128xf32>
      %c0_43 = arith.constant 0 : index
      %c0_44 = arith.constant 0 : index
      %115 = vector.load %arg3[%c0_43, %c0_44] : memref<1x128xf32, #tpu.memory_space<vmem>>, vector<1x128xf32>
      %116 = vector.broadcast %115 : vector<1x128xf32> to vector<8x128xf32>
      %117 = arith.addf %114, %116 : vector<8x128xf32>
      %118 = arith.truncf %117 : vector<8x128xf32> to vector<8x128xbf16>
      %c0_45 = arith.constant 0 : index
      %c0_46 = arith.constant 0 : index
      %119 = vector.load %arg9[%c0_45, %c0_46] : memref<8x128xbf16, #tpu.memory_space<vmem>>, vector<8x128xbf16>
      tpu.vector_store %arg9[%c0_45, %c0_46], %118 {strides = array<i32>} : memref<8x128xbf16, #tpu.memory_space<vmem>>, vector<8x128xbf16>,
    } else {
    }
    %c0_i32_1 = arith.constant 0 : i32
    %c0 = arith.constant 0 : index
    %c0_2 = arith.constant 0 : index
    %3 = vector.load %arg9[%c0, %c0_2] : memref<8x128xbf16, #tpu.memory_space<vmem>>, vector<8x128xbf16>
    %4 = arith.index_cast %c0_i32_1 : i32 to index
    %c0_3 = arith.constant 0 : index
    %c0_4 = arith.constant 0 : index
    %5 = vector.load %arg4[%4, %c0_3, %c0_4] : memref<2x8x128xf32, #tpu.memory_space<vmem>>, vector<1x8x128xf32>
    %6 = vector.shape_cast %5 : vector<1x8x128xf32> to vector<8x128xf32>
    %7 = arith.index_cast %c0_i32_1 : i32 to index
    %c0_5 = arith.constant 0 : index
    %c0_6 = arith.constant 0 : index
    %8 = vector.load %arg7[%7, %c0_5, %c0_6] : memref<2x2x384xf32, #tpu.memory_space<vmem>>, vector<1x2x384xf32>
    %9 = vector.shape_cast %8 : vector<1x2x384xf32> to vector<2x384xf32>
    %10 = arith.index_cast %c0_i32_1 : i32 to index
    %c0_7 = arith.constant 0 : index
    %c0_8 = arith.constant 0 : index
    %11 = vector.load %arg5[%10, %c0_7, %c0_8] : memref<2x128x384xbf16, #tpu.memory_space<vmem>>, vector<1x128x384xbf16>
    %12 = vector.shape_cast %11 : vector<1x128x384xbf16> to vector<128x384xbf16>
    %cst = arith.constant dense<0.000000e+00> : vector<8x384xf32>
    %13 = tpu.matmul %3, %12, %cst {dimension_numbers = #tpu.dot_dimension_numbers<[1], [0], [0], [1], [0, 0, 1, 1], [], []>} : vector<8x128xbf16>, vector<128x384xbf16>, vector<8x384xf32> -> vector<8x384xf32>
    %14 = vector.extract_strided_slice %9 {offsets = [0, 0], sizes = [1, 384], strides = [1, 1]} : vector<2x384xf32> to vector<1x384xf32>
    %15 = vector.broadcast %14 : vector<1x384xf32> to vector<8x384xf32>
    %16 = arith.addf %13, %15 : vector<8x384xf32>
    %17 = arith.truncf %6 : vector<8x128xf32> to vector<8x128xbf16>
    %18 = arith.index_cast %c0_i32_1 : i32 to index
    %c0_9 = arith.constant 0 : index
    %c0_10 = arith.constant 0 : index
    %19 = vector.load %arg6[%18, %c0_9, %c0_10] : memref<2x128x384xbf16, #tpu.memory_space<vmem>>, vector<1x128x384xbf16>
    %20 = vector.shape_cast %19 : vector<1x128x384xbf16> to vector<128x384xbf16>
    %cst_11 = arith.constant dense<0.000000e+00> : vector<8x384xf32>
    %21 = tpu.matmul %17, %20, %cst_11 {dimension_numbers = #tpu.dot_dimension_numbers<[1], [0], [0], [1], [0, 0, 1, 1], [], []>} : vector<8x128xbf16>, vector<128x384xbf16>, vector<8x384xf32> -> vector<8x384xf32>
    %22 = vector.extract_strided_slice %9 {offsets = [1, 0], sizes = [1, 384], strides = [1, 1]} : vector<2x384xf32> to vector<1x384xf32>
    %23 = vector.broadcast %22 : vector<1x384xf32> to vector<8x384xf32>
    %24 = arith.addf %21, %23 : vector<8x384xf32>
    %25 = vector.extract_strided_slice %16 {offsets = [0, 0], sizes = [8, 128], strides = [1, 1]} : vector<8x384xf32> to vector<8x128xf32>
    %26 = vector.extract_strided_slice %24 {offsets = [0, 0], sizes = [8, 128], strides = [1, 1]} : vector<8x384xf32> to vector<8x128xf32>
    %27 = arith.addf %25, %26 : vector<8x128xf32>
    %28 = arith.negf %27 : vector<8x128xf32>
    %29 = math.exp %28 : vector<8x128xf32>
    %cst_12 = arith.constant 1.000000e+00 : f32
    %30 = vector.broadcast %cst_12 : f32 to vector<8x128xf32>
    %31 = arith.addf %30, %29 : vector<8x128xf32>
    %32 = arith.divf %30, %31 : vector<8x128xf32>
    %33 = vector.extract_strided_slice %16 {offsets = [0, 128], sizes = [8, 128], strides = [1, 1]} : vector<8x384xf32> to vector<8x128xf32>
    %34 = vector.extract_strided_slice %24 {offsets = [0, 128], sizes = [8, 128], strides = [1, 1]} : vector<8x384xf32> to vector<8x128xf32>
    %35 = arith.addf %33, %34 : vector<8x128xf32>
    %36 = arith.negf %35 : vector<8x128xf32>
    %37 = math.exp %36 : vector<8x128xf32>
    %cst_13 = arith.constant 1.000000e+00 : f32
    %38 = vector.broadcast %cst_13 : f32 to vector<8x128xf32>
    %39 = arith.addf %38, %37 : vector<8x128xf32>
    %40 = arith.divf %38, %39 : vector<8x128xf32>
    %41 = vector.extract_strided_slice %16 {offsets = [0, 256], sizes = [8, 128], strides = [1, 1]} : vector<8x384xf32> to vector<8x128xf32>
    %42 = vector.extract_strided_slice %24 {offsets = [0, 256], sizes = [8, 128], strides = [1, 1]} : vector<8x384xf32> to vector<8x128xf32>
    %43 = arith.mulf %32, %42 : vector<8x128xf32>
    %44 = arith.addf %41, %43 : vector<8x128xf32>
    %45 = math.tanh %44 : vector<8x128xf32>
    %cst_14 = arith.constant 1.000000e+00 : f32
    %46 = vector.broadcast %cst_14 : f32 to vector<8x128xf32>
    %47 = arith.subf %46, %40 : vector<8x128xf32>
    %48 = arith.mulf %47, %45 : vector<8x128xf32>
    %49 = arith.mulf %40, %6 : vector<8x128xf32>
    %50 = arith.addf %48, %49 : vector<8x128xf32>
    %51 = arith.index_cast %c0_i32_1 : i32 to index
    %c0_15 = arith.constant 0 : index
    %c0_16 = arith.constant 0 : index
    %52 = vector.load %arg8[%51, %c0_15, %c0_16] : memref<2x8x128xf32, #tpu.memory_space<vmem>>, vector<1x8x128xf32>
    %53 = vector.shape_cast %52 : vector<1x8x128xf32> to vector<8x128xf32>
    %54 = vector.shape_cast %50 : vector<8x128xf32> to vector<1x8x128xf32>
    tpu.vector_store %arg8[%51, %c0_15, %c0_16], %54 {strides = array<i32>} : memref<2x8x128xf32, #tpu.memory_space<vmem>>, vector<1x8x128xf32>,
    %55 = arith.truncf %50 : vector<8x128xf32> to vector<8x128xbf16>
    %c0_17 = arith.constant 0 : index
    %c0_18 = arith.constant 0 : index
    %56 = vector.load %arg9[%c0_17, %c0_18] : memref<8x128xbf16, #tpu.memory_space<vmem>>, vector<8x128xbf16>
    tpu.vector_store %arg9[%c0_17, %c0_18], %55 {strides = array<i32>} : memref<8x128xbf16, #tpu.memory_space<vmem>>, vector<8x128xbf16>,
    %c1_i32 = arith.constant 1 : i32
    %c0_19 = arith.constant 0 : index
    %c0_20 = arith.constant 0 : index
    %57 = vector.load %arg9[%c0_19, %c0_20] : memref<8x128xbf16, #tpu.memory_space<vmem>>, vector<8x128xbf16>
    %58 = arith.index_cast %c1_i32 : i32 to index
    %c0_21 = arith.constant 0 : index
    %c0_22 = arith.constant 0 : index
    %59 = vector.load %arg4[%58, %c0_21, %c0_22] : memref<2x8x128xf32, #tpu.memory_space<vmem>>, vector<1x8x128xf32>
    %60 = vector.shape_cast %59 : vector<1x8x128xf32> to vector<8x128xf32>
    %61 = arith.index_cast %c1_i32 : i32 to index
    %c0_23 = arith.constant 0 : index
    %c0_24 = arith.constant 0 : index
    %62 = vector.load %arg7[%61, %c0_23, %c0_24] : memref<2x2x384xf32, #tpu.memory_space<vmem>>, vector<1x2x384xf32>
    %63 = vector.shape_cast %62 : vector<1x2x384xf32> to vector<2x384xf32>
    %64 = arith.index_cast %c1_i32 : i32 to index
    %c0_25 = arith.constant 0 : index
    %c0_26 = arith.constant 0 : index
    %65 = vector.load %arg5[%64, %c0_25, %c0_26] : memref<2x128x384xbf16, #tpu.memory_space<vmem>>, vector<1x128x384xbf16>
    %66 = vector.shape_cast %65 : vector<1x128x384xbf16> to vector<128x384xbf16>
    %cst_27 = arith.constant dense<0.000000e+00> : vector<8x384xf32>
    %67 = tpu.matmul %57, %66, %cst_27 {dimension_numbers = #tpu.dot_dimension_numbers<[1], [0], [0], [1], [0, 0, 1, 1], [], []>} : vector<8x128xbf16>, vector<128x384xbf16>, vector<8x384xf32> -> vector<8x384xf32>
    %68 = vector.extract_strided_slice %63 {offsets = [0, 0], sizes = [1, 384], strides = [1, 1]} : vector<2x384xf32> to vector<1x384xf32>
    %69 = vector.broadcast %68 : vector<1x384xf32> to vector<8x384xf32>
    %70 = arith.addf %67, %69 : vector<8x384xf32>
    %71 = arith.truncf %60 : vector<8x128xf32> to vector<8x128xbf16>
    %72 = arith.index_cast %c1_i32 : i32 to index
    %c0_28 = arith.constant 0 : index
    %c0_29 = arith.constant 0 : index
    %73 = vector.load %arg6[%72, %c0_28, %c0_29] : memref<2x128x384xbf16, #tpu.memory_space<vmem>>, vector<1x128x384xbf16>
    %74 = vector.shape_cast %73 : vector<1x128x384xbf16> to vector<128x384xbf16>
    %cst_30 = arith.constant dense<0.000000e+00> : vector<8x384xf32>
    %75 = tpu.matmul %71, %74, %cst_30 {dimension_numbers = #tpu.dot_dimension_numbers<[1], [0], [0], [1], [0, 0, 1, 1], [], []>} : vector<8x128xbf16>, vector<128x384xbf16>, vector<8x384xf32> -> vector<8x384xf32>
    %76 = vector.extract_strided_slice %63 {offsets = [1, 0], sizes = [1, 384], strides = [1, 1]} : vector<2x384xf32> to vector<1x384xf32>
    %77 = vector.broadcast %76 : vector<1x384xf32> to vector<8x384xf32>
    %78 = arith.addf %75, %77 : vector<8x384xf32>
    %79 = vector.extract_strided_slice %70 {offsets = [0, 0], sizes = [8, 128], strides = [1, 1]} : vector<8x384xf32> to vector<8x128xf32>
    %80 = vector.extract_strided_slice %78 {offsets = [0, 0], sizes = [8, 128], strides = [1, 1]} : vector<8x384xf32> to vector<8x128xf32>
    %81 = arith.addf %79, %80 : vector<8x128xf32>
    %82 = arith.negf %81 : vector<8x128xf32>
    %83 = math.exp %82 : vector<8x128xf32>
    %cst_31 = arith.constant 1.000000e+00 : f32
    %84 = vector.broadcast %cst_31 : f32 to vector<8x128xf32>
    %85 = arith.addf %84, %83 : vector<8x128xf32>
    %86 = arith.divf %84, %85 : vector<8x128xf32>
    %87 = vector.extract_strided_slice %70 {offsets = [0, 128], sizes = [8, 128], strides = [1, 1]} : vector<8x384xf32> to vector<8x128xf32>
    %88 = vector.extract_strided_slice %78 {offsets = [0, 128], sizes = [8, 128], strides = [1, 1]} : vector<8x384xf32> to vector<8x128xf32>
    %89 = arith.addf %87, %88 : vector<8x128xf32>
    %90 = arith.negf %89 : vector<8x128xf32>
    %91 = math.exp %90 : vector<8x128xf32>
    %cst_32 = arith.constant 1.000000e+00 : f32
    %92 = vector.broadcast %cst_32 : f32 to vector<8x128xf32>
    %93 = arith.addf %92, %91 : vector<8x128xf32>
    %94 = arith.divf %92, %93 : vector<8x128xf32>
    %95 = vector.extract_strided_slice %70 {offsets = [0, 256], sizes = [8, 128], strides = [1, 1]} : vector<8x384xf32> to vector<8x128xf32>
    %96 = vector.extract_strided_slice %78 {offsets = [0, 256], sizes = [8, 128], strides = [1, 1]} : vector<8x384xf32> to vector<8x128xf32>
    %97 = arith.mulf %86, %96 : vector<8x128xf32>
    %98 = arith.addf %95, %97 : vector<8x128xf32>
    %99 = math.tanh %98 : vector<8x128xf32>
    %cst_33 = arith.constant 1.000000e+00 : f32
    %100 = vector.broadcast %cst_33 : f32 to vector<8x128xf32>
    %101 = arith.subf %100, %94 : vector<8x128xf32>
    %102 = arith.mulf %101, %99 : vector<8x128xf32>
    %103 = arith.mulf %94, %60 : vector<8x128xf32>
    %104 = arith.addf %102, %103 : vector<8x128xf32>
    %105 = arith.index_cast %c1_i32 : i32 to index
    %c0_34 = arith.constant 0 : index
    %c0_35 = arith.constant 0 : index
    %106 = vector.load %arg8[%105, %c0_34, %c0_35] : memref<2x8x128xf32, #tpu.memory_space<vmem>>, vector<1x8x128xf32>
    %107 = vector.shape_cast %106 : vector<1x8x128xf32> to vector<8x128xf32>
    %108 = vector.shape_cast %104 : vector<8x128xf32> to vector<1x8x128xf32>
    tpu.vector_store %arg8[%105, %c0_34, %c0_35], %108 {strides = array<i32>} : memref<2x8x128xf32, #tpu.memory_space<vmem>>, vector<1x8x128xf32>,
    %109 = arith.truncf %104 : vector<8x128xf32> to vector<8x128xbf16>
    %c0_36 = arith.constant 0 : index
    %c0_37 = arith.constant 0 : index
    %110 = vector.load %arg9[%c0_36, %c0_37] : memref<8x128xbf16, #tpu.memory_space<vmem>>, vector<8x128xbf16>
    tpu.vector_store %arg9[%c0_36, %c0_37], %109 {strides = array<i32>} : memref<8x128xbf16, #tpu.memory_space<vmem>>, vector<8x128xbf16>,
    %c2_i32 = arith.constant 2 : i32
    return
  }
  func.func @transform_0(%arg0: i32) -> (i32, i32) {
    %c0_i32 = arith.constant 0 : i32
    %c0_i32_0 = arith.constant 0 : i32
    %c0_i32_1 = arith.constant 0 : i32
    return %c0_i32, %c0_i32_0 : i32, i32
  }
  func.func @transform_1(%arg0: i32) -> (i32, i32) {
    %c0_i32 = arith.constant 0 : i32
    %c0_i32_0 = arith.constant 0 : i32
    %c0_i32_1 = arith.constant 0 : i32
    return %c0_i32, %c0_i32_0 : i32, i32
  }
  func.func @transform_2(%arg0: i32) -> (i32, i32) {
    %c0_i32 = arith.constant 0 : i32
    %c0_i32_0 = arith.constant 0 : i32
    %c0_i32_1 = arith.constant 0 : i32
    return %c0_i32, %c0_i32_0 : i32, i32
  }
  func.func @transform_3(%arg0: i32) -> (i32, i32, i32) {
    %c0_i32 = arith.constant 0 : i32
    %c0_i32_0 = arith.constant 0 : i32
    %c0_i32_1 = arith.constant 0 : i32
    return %arg0, %c0_i32, %c0_i32_0 : i32, i32, i32
  }
  func.func @transform_4(%arg0: i32) -> (i32, i32, i32) {
    %c0_i32 = arith.constant 0 : i32
    %c0_i32_0 = arith.constant 0 : i32
    %c0_i32_1 = arith.constant 0 : i32
    return %arg0, %c0_i32, %c0_i32_0 : i32, i32, i32
  }
  func.func @transform_5(%arg0: i32) -> (i32, i32, i32) {
    %c0_i32 = arith.constant 0 : i32
    %c0_i32_0 = arith.constant 0 : i32
    %c0_i32_1 = arith.constant 0 : i32
    return %arg0, %c0_i32, %c0_i32_0 : i32, i32, i32
  }
  func.func @transform_6(%arg0: i32) -> (i32, i32, i32) {
    %c0_i32 = arith.constant 0 : i32
    %c0_i32_0 = arith.constant 0 : i32
    %c0_i32_1 = arith.constant 0 : i32
    return %arg0, %c0_i32, %c0_i32_0 : i32, i32, i32
  }
  func.func @transform_7(%arg0: i32) -> (i32, i32, i32) {
    %c0_i32 = arith.constant 0 : i32
    %c0_i32_0 = arith.constant 0 : i32
    %c0_i32_1 = arith.constant 0 : i32
    return %arg0, %c0_i32, %c0_i32_0 : i32, i32, i32
  }
}

</mosaic_0001>

<llo_original>
// kernel: encoder_rnn_forward.1
$region0: #{encoder_rnn_forward.1}
  #allocation0 [shape = 'u32[]', space=smem, size = 0x4, offset = 0x4, fixed_abs, tag = 'smem constant byte address 0x4 - core index']
  #allocation1 [shape = 'u32[144,128]{1,0:T(1,128)}', space=vmem, size = 0x12000, scoped, tag = 'internal scratch']
  #allocation2 [shape = 'bf16[8,128]{1,0:T(8,128)(2,1)}', space=vmem, size = 0x800, scoped, tag = 'scratch operand']
  %s0 = inlined_call_operand.vmem [shape: f32[8,128], index: 0, kind: input, shape index: {}]
  %s1 = inlined_call_operand.hbm [shape: bf16[128,128], index: 1, kind: input, shape index: {}]
  %s2 = inlined_call_operand.vmem [shape: f32[1,128], index: 2, kind: input, shape index: {}]
  %s3 = inlined_call_operand.vmem [shape: f32[2,8,128], index: 3, kind: input, shape index: {}]
  %s4 = inlined_call_operand.hbm [shape: bf16[2,128,384], index: 4, kind: input, shape index: {}]
  %s5 = inlined_call_operand.hbm [shape: bf16[2,128,384], index: 5, kind: input, shape index: {}]
  %s6 = inlined_call_operand.vmem [shape: f32[2,2,384], index: 6, kind: input, shape index: {}]
  %s7 = inlined_call_operand.vmem [shape: f32[2,8,128], index: 7, kind: output, shape index: {}]
  %s8 = sld [smem:[#allocation0]]
  $region54: #{encoder_rnn_forward.1} parent=0
    _
  %s10 = ssub.s32 1, %s8
  %s11 = scalar_select 0, %s10, %s8
  $region1: #{encoder_rnn_forward.1} parent=0
    #allocation3 [shape = 'u8[32768]{0}', space=vmem, size = 0x8000, scoped, tag = 'input window, operand 1, single buffered']
    #allocation4 [shape = 's32[1]{0}', space=sflag, size = 0x4, scoped, tag = 'scoped memory for encoder_rnn_forward.1']
    #allocation5 [shape = 'u8[196608]{0}', space=vmem, size = 0x30000, scoped, tag = 'input window, operand 4, single buffered']
    #allocation6 [shape = 's32[1]{0}', space=sflag, size = 0x4, scoped, tag = 'scoped memory for encoder_rnn_forward.1']
    #allocation7 [shape = 'u8[196608]{0}', space=vmem, size = 0x30000, scoped, tag = 'input window, operand 5, single buffered']
    %12 = vsyncpa [#allocation4], 0
    %13 = vsyncpa [#allocation6], 0
    // Predicated region
    $region2: #{encoder_rnn_forward.1} parent=1 // pred_check
      _
    $region3: #{encoder_rnn_forward.1} parent=1 // pred_check_branch
      %15 = sbr.rel (0) target = $region5
    $region4: #{encoder_rnn_forward.1} parent=1 // pred_region
      _
    $region5: #{encoder_rnn_forward.1} parent=1 // pred_fallthru
      _
    // Predicated region
    $region6: #{encoder_rnn_forward.1} parent=1 // pred_check
      _
    $region7: #{encoder_rnn_forward.1} parent=1 // pred_check_branch
      %17 = sbr.rel (0) target = $region9
    $region8: #{encoder_rnn_forward.1} parent=1 // pred_region
      %s19 = ssub.s32 1024, 1024
      %20 = vsyncadd [#allocation4], %s19
      %s21 = sshll.u32 [#allocation3], 4
      %s22 = int_to_ptr.vmem [resolvable:$true] %s21
      %27 = dma.hbm_to_vmem [thread:$0]  %s1, 1024, %s22, [#allocation4], 64, 64, 4
    $region9: #{encoder_rnn_forward.1} parent=1 // pred_fallthru
      _
    // Predicated region
    $region10: #{encoder_rnn_forward.1} parent=1 // pred_check
      _
    $region11: #{encoder_rnn_forward.1} parent=1 // pred_check_branch
      %29 = sbr.rel (0) target = $region13
    $region12: #{encoder_rnn_forward.1} parent=1 // pred_region
      _
    $region13: #{encoder_rnn_forward.1} parent=1 // pred_fallthru
      _
    // Predicated region
    $region14: #{encoder_rnn_forward.1} parent=1 // pred_check
      _
    $region15: #{encoder_rnn_forward.1} parent=1 // pred_check_branch
      %31 = sbr.rel (0) target = $region17
    $region16: #{encoder_rnn_forward.1} parent=1 // pred_region
      _
    $region17: #{encoder_rnn_forward.1} parent=1 // pred_fallthru
      _
    // Predicated region
    $region18: #{encoder_rnn_forward.1} parent=1 // pred_check
      _
    $region19: #{encoder_rnn_forward.1} parent=1 // pred_check_branch
      %33 = sbr.rel (0) target = $region21
    $region20: #{encoder_rnn_forward.1} parent=1 // pred_region
      %s35 = ssub.s32 6144, 6144
      %36 = vsyncadd [#allocation6], %s35
      %s37 = sshll.u32 [#allocation5], 4
      %s38 = int_to_ptr.vmem [resolvable:$true] %s37
      %43 = dma.hbm_to_vmem [thread:$0]  %s4, 6144, %s38, [#allocation6], 192, 192, 12
    $region21: #{encoder_rnn_forward.1} parent=1 // pred_fallthru
      _
    // Predicated region
    $region22: #{encoder_rnn_forward.1} parent=1 // pred_check
      _
    $region23: #{encoder_rnn_forward.1} parent=1 // pred_check_branch
      %45 = sbr.rel (0) target = $region25
    $region24: #{encoder_rnn_forward.1} parent=1 // pred_region
      %s47 = ssub.s32 6144, 6144
      %48 = vsyncadd [#allocation6], %s47
      %s49 = sshll.u32 [#allocation7], 4
      %s50 = int_to_ptr.vmem [resolvable:$true] %s49
      %55 = dma.hbm_to_vmem [thread:$0]  %s5, 6144, %s50, [#allocation6], 192, 192, 12
    $region25: #{encoder_rnn_forward.1} parent=1 // pred_fallthru
      _
    // Predicated region
    $region26: #{encoder_rnn_forward.1} parent=1 // pred_check
      _
    $region27: #{encoder_rnn_forward.1} parent=1 // pred_check_branch
      %57 = sbr.rel (0) target = $region29
    $region28: #{encoder_rnn_forward.1} parent=1 // pred_region
      _
    $region29: #{encoder_rnn_forward.1} parent=1 // pred_fallthru
      _
    // Predicated region
    $region30: #{encoder_rnn_forward.1} parent=1 // pred_check
      _
    $region31: #{encoder_rnn_forward.1} parent=1 // pred_check_branch
      %59 = sbr.rel (0) target = $region33
    $region32: #{encoder_rnn_forward.1} parent=1 // pred_region
      %60 = dma.done [#allocation4], 1024
    $region33: #{encoder_rnn_forward.1} parent=1 // pred_fallthru
      _
    // Predicated region
    $region34: #{encoder_rnn_forward.1} parent=1 // pred_check
      _
    $region35: #{encoder_rnn_forward.1} parent=1 // pred_check_branch
      %62 = sbr.rel (0) target = $region37
    $region36: #{encoder_rnn_forward.1} parent=1 // pred_region
      %63 = dma.done [#allocation6], 6144
    $region37: #{encoder_rnn_forward.1} parent=1 // pred_fallthru
      _
    // Predicated region
    $region38: #{encoder_rnn_forward.1} parent=1 // pred_check
      _
    $region39: #{encoder_rnn_forward.1} parent=1 // pred_check_branch
      %65 = sbr.rel (0) target = $region41
    $region40: #{encoder_rnn_forward.1} parent=1 // pred_region
      %66 = dma.done [#allocation6], 6144
    $region41: #{encoder_rnn_forward.1} parent=1 // pred_fallthru
      _
    %p68 = scmp.eq.s32.totalorder 0, 0
    // Predicated region
    $region42: #{encoder_rnn_forward.1} parent=1 // pred_check
      %p69 = pneg %p68
    $region43: #{encoder_rnn_forward.1} parent=1 // pred_check_branch
      %71 = sbr.rel (%p69) target = $region45
    $region44: #{encoder_rnn_forward.1} parent=1 // pred_region
      %v72 = vld [vmem:[%s0] sm:$0xff]
      %v73 = vpack.c.bf16 %v72, %v72
      %v74 = vld [vmem:[#allocation3] sm:$0xf]
      %v75 = vld [vmem:[#allocation3 + $0x4] sm:$0xf]
      %v76 = vld [vmem:[#allocation3 + $0x8] sm:$0xf]
      %v77 = vld [vmem:[#allocation3 + $0xc] sm:$0xf]
      %v78 = vld [vmem:[#allocation3 + $0x10] sm:$0xf]
      %v79 = vld [vmem:[#allocation3 + $0x14] sm:$0xf]
      %v80 = vld [vmem:[#allocation3 + $0x18] sm:$0xf]
      %v81 = vld [vmem:[#allocation3 + $0x1c] sm:$0xf]
      %v82 = vld [vmem:[#allocation3 + $0x20] sm:$0xf]
      %v83 = vld [vmem:[#allocation3 + $0x24] sm:$0xf]
      %v84 = vld [vmem:[#allocation3 + $0x28] sm:$0xf]
      %v85 = vld [vmem:[#allocation3 + $0x2c] sm:$0xf]
      %v86 = vld [vmem:[#allocation3 + $0x30] sm:$0xf]
      %v87 = vld [vmem:[#allocation3 + $0x34] sm:$0xf]
      %v88 = vld [vmem:[#allocation3 + $0x38] sm:$0xf]
      %v89 = vld [vmem:[#allocation3 + $0x3c] sm:$0xf]
      %v90 = vld [vmem:[%s2] sm:$0x1]
      %v92 = vlaneseq
      %v93 = vshrl.u32 %v92, 7
      %v94 = vsub.s32 0, %v93
      %v95 = vrot.slane %v90, %v94
      %v113 = vunpack.c.l.b16 %v74
      %v114 = vunpack.c.l.b16 %v75
      %v115 = vunpack.c.l.b16 %v76
      %v116 = vunpack.c.l.b16 %v77
      %v117 = vunpack.c.l.b16 %v78
      %v118 = vunpack.c.l.b16 %v79
      %v119 = vunpack.c.l.b16 %v80
      %v120 = vunpack.c.l.b16 %v81
      %v121 = vunpack.c.l.b16 %v82
      %v122 = vunpack.c.l.b16 %v83
      %v123 = vunpack.c.l.b16 %v84
      %v124 = vunpack.c.l.b16 %v85
      %v125 = vunpack.c.l.b16 %v86
      %v126 = vunpack.c.l.b16 %v87
      %v127 = vunpack.c.l.b16 %v88
      %v128 = vunpack.c.l.b16 %v89
      %v129 = vpack.c.b16 %v114, %v113
      %v130 = vpack.c.b16 %v116, %v115
      %v131 = vpack.c.b16 %v118, %v117
      %v132 = vpack.c.b16 %v120, %v119
      %v133 = vpack.c.b16 %v122, %v121
      %v134 = vpack.c.b16 %v124, %v123
      %v135 = vpack.c.b16 %v126, %v125
      %v136 = vpack.c.b16 %v128, %v127
      %145 = vmatprep.subr.bf16.mxu0 0
      %146 = vmatpush1.bf16.msra.mxu0 %v129
      %147 = vmatprep.subr.bf16.mxu0 0
      %148 = vmatpush1.bf16.msra.mxu0 %v130
      %149 = vmatprep.subr.bf16.mxu0 0
      %150 = vmatpush1.bf16.msra.mxu0 %v131
      %151 = vmatprep.subr.bf16.mxu0 0
      %152 = vmatpush1.bf16.msra.mxu0 %v132
      %153 = vmatprep.subr.bf16.mxu0 0
      %154 = vmatpush1.bf16.msra.mxu0 %v133
      %155 = vmatprep.subr.bf16.mxu0 0
      %156 = vmatpush1.bf16.msra.mxu0 %v134
      %157 = vmatprep.subr.bf16.mxu0 0
      %158 = vmatpush1.bf16.msra.mxu0 %v135
      %159 = vmatprep.subr.bf16.mxu0 0
      %160 = vmatpush1.bf16.msra.mxu0 %v136
      %161 = vmatprep.subr.bf16.mxu0 0
      %162 = vmatpush1.bf16.msra.mxu0 0
      %163 = vmatprep.subr.bf16.mxu0 0
      %164 = vmatpush1.bf16.msra.mxu0 0
      %165 = vmatprep.subr.bf16.mxu0 0
      %166 = vmatpush1.bf16.msra.mxu0 0
      %167 = vmatprep.subr.bf16.mxu0 0
      %168 = vmatpush1.bf16.msra.mxu0 0
      %169 = vmatprep.subr.bf16.mxu0 0
      %170 = vmatpush1.bf16.msra.mxu0 0
      %171 = vmatprep.subr.bf16.mxu0 0
      %172 = vmatpush1.bf16.msra.mxu0 0
      %173 = vmatprep.subr.bf16.mxu0 0
      %174 = vmatpush1.bf16.msra.mxu0 0
      %175 = vmatprep.subr.bf16.mxu0 0
      %176 = vmatpush1.bf16.msra.mxu0 0
      %177 = vmatprep.mubr.bf16.mxu0 0
      %178 = vmatmul.mubr.bf16.gmra.mrb[0].mxu0 %v73
      %v179 = vpop.f32.mrb[0].mxu0
      %v180 = vadd.f32 %v95, %v179
      %v181 = vpop.f32.mrb[0].mxu0
      %v182 = vpop.f32.mrb[0].mxu0
      %v183 = vpop.f32.mrb[0].mxu0
      %184 = vdwg.mxu0
      %v185 = vpack.c.bf16 %v180, %v180
      %186 = vst [vmem:[#allocation2] sm:$0xf] %v185
    $region45: #{encoder_rnn_forward.1} parent=1 // pred_fallthru
      _
    %v187 = vld [vmem:[#allocation2] sm:$0xf]
    %v188 = vld [vmem:[%s3] sm:$0xff]
    %v189 = vld [vmem:[%s6] sm:$0x3f]
    %v190 = vld [vmem:[#allocation5] sm:$0xff]
    %v191 = vld [vmem:[#allocation5 + $0x8] sm:$0xf]
    %v192 = vld [vmem:[#allocation5 + $0xc] sm:$0xff]
    %v193 = vld [vmem:[#allocation5 + $0x14] sm:$0xf]
    %v194 = vld [vmem:[#allocation5 + $0x18] sm:$0xff]
    %v195 = vld [vmem:[#allocation5 + $0x20] sm:$0xf]
    %v196 = vld [vmem:[#allocation5 + $0x24] sm:$0xff]
    %v197 = vld [vmem:[#allocation5 + $0x2c] sm:$0xf]
    %v198 = vld [vmem:[#allocation5 + $0x30] sm:$0xff]
    %v199 = vld [vmem:[#allocation5 + $0x38] sm:$0xf]
    %v200 = vld [vmem:[#allocation5 + $0x3c] sm:$0xff]
    %v201 = vld [vmem:[#allocation5 + $0x44] sm:$0xf]
    %v202 = vld [vmem:[#allocation5 + $0x48] sm:$0xff]
    %v203 = vld [vmem:[#allocation5 + $0x50] sm:$0xf]
    %v204 = vld [vmem:[#allocation5 + $0x54] sm:$0xff]
    %v205 = vld [vmem:[#allocation5 + $0x5c] sm:$0xf]
    %v206 = vld [vmem:[#allocation5 + $0x60] sm:$0xff]
    %v207 = vld [vmem:[#allocation5 + $0x68] sm:$0xf]
    %v208 = vld [vmem:[#allocation5 + $0x6c] sm:$0xff]
    %v209 = vld [vmem:[#allocation5 + $0x74] sm:$0xf]
    %v210 = vld [vmem:[#allocation5 + $0x78] sm:$0xff]
    %v211 = vld [vmem:[#allocation5 + $0x80] sm:$0xf]
    %v212 = vld [vmem:[#allocation5 + $0x84] sm:$0xff]
    %v213 = vld [vmem:[#allocation5 + $0x8c] sm:$0xf]
    %v214 = vld [vmem:[#allocation5 + $0x90] sm:$0xff]
    %v215 = vld [vmem:[#allocation5 + $0x98] sm:$0xf]
    %v216 = vld [vmem:[#allocation5 + $0x9c] sm:$0xff]
    %v217 = vld [vmem:[#allocation5 + $0xa4] sm:$0xf]
    %v218 = vld [vmem:[#allocation5 + $0xa8] sm:$0xff]
    %v219 = vld [vmem:[#allocation5 + $0xb0] sm:$0xf]
    %v220 = vld [vmem:[#allocation5 + $0xb4] sm:$0xff]
    %v221 = vld [vmem:[#allocation5 + $0xbc] sm:$0xf]
    %v223 = vlaneseq
    %v224 = vshrl.u32 %v223, 7
    %v225 = vsub.s32 0, %v224
    %v226 = vrot.slane %v189, %v225
    %v227 = vlaneseq
    %v228 = vshrl.u32 %v227, 7
    %v229 = vsub.s32 2, %v228
    %v230 = vrot.slane %v189, %v229
    %v231 = vlaneseq
    %v232 = vshrl.u32 %v231, 7
    %v233 = vsub.s32 4, %v232
    %v234 = vrot.slane %v189, %v233
    %v238 = vlaneseq
    %v239 = vshrl.u32 %v238, 7
    %v240 = vsub.s32 0, %v239
    %v241 = vrot.slane %v226, %v240
    %v242 = vlaneseq
    %v243 = vshrl.u32 %v242, 7
    %v244 = vsub.s32 0, %v243
    %v245 = vrot.slane %v230, %v244
    %v246 = vlaneseq
    %v247 = vshrl.u32 %v246, 7
    %v248 = vsub.s32 0, %v247
    %v249 = vrot.slane %v234, %v248
    %v282 = vunpack.c.l.b16 %v190
    %v283 = vunpack.c.h.b16 %v190
    %v284 = vunpack.c.l.b16 %v191
    %v285 = vunpack.c.l.b16 %v192
    %v286 = vunpack.c.h.b16 %v192
    %v287 = vunpack.c.l.b16 %v193
    %v288 = vunpack.c.l.b16 %v194
    %v289 = vunpack.c.h.b16 %v194
    %v290 = vunpack.c.l.b16 %v195
    %v291 = vunpack.c.l.b16 %v196
    %v292 = vunpack.c.h.b16 %v196
    %v293 = vunpack.c.l.b16 %v197
    %v294 = vunpack.c.l.b16 %v198
    %v295 = vunpack.c.h.b16 %v198
    %v296 = vunpack.c.l.b16 %v199
    %v297 = vunpack.c.l.b16 %v200
    %v298 = vunpack.c.h.b16 %v200
    %v299 = vunpack.c.l.b16 %v201
    %v300 = vunpack.c.l.b16 %v202
    %v301 = vunpack.c.h.b16 %v202
    %v302 = vunpack.c.l.b16 %v203
    %v303 = vunpack.c.l.b16 %v204
    %v304 = vunpack.c.h.b16 %v204
    %v305 = vunpack.c.l.b16 %v205
    %v306 = vunpack.c.l.b16 %v206
    %v307 = vunpack.c.h.b16 %v206
    %v308 = vunpack.c.l.b16 %v207
    %v309 = vunpack.c.l.b16 %v208
    %v310 = vunpack.c.h.b16 %v208
    %v311 = vunpack.c.l.b16 %v209
    %v312 = vunpack.c.l.b16 %v210
    %v313 = vunpack.c.h.b16 %v210
    %v314 = vunpack.c.l.b16 %v211
    %v315 = vunpack.c.l.b16 %v212
    %v316 = vunpack.c.h.b16 %v212
    %v317 = vunpack.c.l.b16 %v213
    %v318 = vunpack.c.l.b16 %v214
    %v319 = vunpack.c.h.b16 %v214
    %v320 = vunpack.c.l.b16 %v215
    %v321 = vunpack.c.l.b16 %v216
    %v322 = vunpack.c.h.b16 %v216
    %v323 = vunpack.c.l.b16 %v217
    %v324 = vunpack.c.l.b16 %v218
    %v325 = vunpack.c.h.b16 %v218
    %v326 = vunpack.c.l.b16 %v219
    %v327 = vunpack.c.l.b16 %v220
    %v328 = vunpack.c.h.b16 %v220
    %v329 = vunpack.c.l.b16 %v221
    %v330 = vpack.c.b16 %v285, %v282
    %v331 = vpack.c.b16 %v286, %v283
    %v332 = vpack.c.b16 %v287, %v284
    %v333 = vpack.c.b16 %v291, %v288
    %v334 = vpack.c.b16 %v292, %v289
    %v335 = vpack.c.b16 %v293, %v290
    %v336 = vpack.c.b16 %v297, %v294
    %v337 = vpack.c.b16 %v298, %v295
    %v338 = vpack.c.b16 %v299, %v296
    %v339 = vpack.c.b16 %v303, %v300
    %v340 = vpack.c.b16 %v304, %v301
    %v341 = vpack.c.b16 %v305, %v302
    %v342 = vpack.c.b16 %v309, %v306
    %v343 = vpack.c.b16 %v310, %v307
    %v344 = vpack.c.b16 %v311, %v308
    %v345 = vpack.c.b16 %v315, %v312
    %v346 = vpack.c.b16 %v316, %v313
    %v347 = vpack.c.b16 %v317, %v314
    %v348 = vpack.c.b16 %v321, %v318
    %v349 = vpack.c.b16 %v322, %v319
    %v350 = vpack.c.b16 %v323, %v320
    %v351 = vpack.c.b16 %v327, %v324
    %v352 = vpack.c.b16 %v328, %v325
    %v353 = vpack.c.b16 %v329, %v326
    %378 = vmatprep.subr.bf16.mxu0 %v331
    %379 = vmatpush1.bf16.msra.mxu0 %v330
    %380 = vmatprep.subr.bf16.mxu0 %v334
    %381 = vmatpush1.bf16.msra.mxu0 %v333
    %382 = vmatprep.subr.bf16.mxu0 %v337
    %383 = vmatpush1.bf16.msra.mxu0 %v336
    %384 = vmatprep.subr.bf16.mxu0 %v340
    %385 = vmatpush1.bf16.msra.mxu0 %v339
    %386 = vmatprep.subr.bf16.mxu0 %v343
    %387 = vmatpush1.bf16.msra.mxu0 %v342
    %388 = vmatprep.subr.bf16.mxu0 %v346
    %389 = vmatpush1.bf16.msra.mxu0 %v345
    %390 = vmatprep.subr.bf16.mxu0 %v349
    %391 = vmatpush1.bf16.msra.mxu0 %v348
    %392 = vmatprep.subr.bf16.mxu0 %v352
    %393 = vmatpush1.bf16.msra.mxu0 %v351
    %394 = vmatprep.subr.bf16.mxu0 0
    %395 = vmatpush1.bf16.msra.mxu0 0
    %396 = vmatprep.subr.bf16.mxu0 0
    %397 = vmatpush1.bf16.msra.mxu0 0
    %398 = vmatprep.subr.bf16.mxu0 0
    %399 = vmatpush1.bf16.msra.mxu0 0
    %400 = vmatprep.subr.bf16.mxu0 0
    %401 = vmatpush1.bf16.msra.mxu0 0
    %402 = vmatprep.subr.bf16.mxu0 0
    %403 = vmatpush1.bf16.msra.mxu0 0
    %404 = vmatprep.subr.bf16.mxu0 0
    %405 = vmatpush1.bf16.msra.mxu0 0
    %406 = vmatprep.subr.bf16.mxu0 0
    %407 = vmatpush1.bf16.msra.mxu0 0
    %408 = vmatprep.subr.bf16.mxu0 0
    %409 = vmatpush1.bf16.msra.mxu0 0
    %410 = vmatprep.mubr.bf16.mxu0 0
    %411 = vmatmul.mubr.bf16.gmra.mrb[0].mxu0 %v187
    %v412 = vpop.f32.mrb[0].mxu0
    %v413 = vadd.f32 %v241, %v412
    %v414 = vpop.f32.mrb[0].mxu0
    %v415 = vadd.f32 %v245, %v414
    %v416 = vpop.f32.mrb[0].mxu0
    %v417 = vpop.f32.mrb[0].mxu0
    %418 = vdwg.mxu0
    %419 = vmatprep.subr.bf16.mxu0 0
    %420 = vmatpush1.bf16.msra.mxu0 %v332
    %421 = vmatprep.subr.bf16.mxu0 0
    %422 = vmatpush1.bf16.msra.mxu0 %v335
    %423 = vmatprep.subr.bf16.mxu0 0
    %424 = vmatpush1.bf16.msra.mxu0 %v338
    %425 = vmatprep.subr.bf16.mxu0 0
    %426 = vmatpush1.bf16.msra.mxu0 %v341
    %427 = vmatprep.subr.bf16.mxu0 0
    %428 = vmatpush1.bf16.msra.mxu0 %v344
    %429 = vmatprep.subr.bf16.mxu0 0
    %430 = vmatpush1.bf16.msra.mxu0 %v347
    %431 = vmatprep.subr.bf16.mxu0 0
    %432 = vmatpush1.bf16.msra.mxu0 %v350
    %433 = vmatprep.subr.bf16.mxu0 0
    %434 = vmatpush1.bf16.msra.mxu0 %v353
    %435 = vmatprep.subr.bf16.mxu0 0
    %436 = vmatpush1.bf16.msra.mxu0 0
    %437 = vmatprep.subr.bf16.mxu0 0
    %438 = vmatpush1.bf16.msra.mxu0 0
    %439 = vmatprep.subr.bf16.mxu0 0
    %440 = vmatpush1.bf16.msra.mxu0 0
    %441 = vmatprep.subr.bf16.mxu0 0
    %442 = vmatpush1.bf16.msra.mxu0 0
    %443 = vmatprep.subr.bf16.mxu0 0
    %444 = vmatpush1.bf16.msra.mxu0 0
    %445 = vmatprep.subr.bf16.mxu0 0
    %446 = vmatpush1.bf16.msra.mxu0 0
    %447 = vmatprep.subr.bf16.mxu0 0
    %448 = vmatpush1.bf16.msra.mxu0 0
    %449 = vmatprep.subr.bf16.mxu0 0
    %450 = vmatpush1.bf16.msra.mxu0 0
    %451 = vmatprep.mubr.bf16.mxu0 0
    %452 = vmatmul.mubr.bf16.gmra.mrb[0].mxu0 %v187
    %v453 = vpop.f32.mrb[0].mxu0
    %v454 = vadd.f32 %v249, %v453
    %v455 = vpop.f32.mrb[0].mxu0
    %v456 = vpop.f32.mrb[0].mxu0
    %v457 = vpop.f32.mrb[0].mxu0
    %458 = vdwg.mxu0
    %v459 = vpack.c.bf16 %v188, %v188
    %v460 = vld [vmem:[#allocation7] sm:$0xff]
    %v461 = vld [vmem:[#allocation7 + $0x8] sm:$0xf]
    %v462 = vld [vmem:[#allocation7 + $0xc] sm:$0xff]
    %v463 = vld [vmem:[#allocation7 + $0x14] sm:$0xf]
    %v464 = vld [vmem:[#allocation7 + $0x18] sm:$0xff]
    %v465 = vld [vmem:[#allocation7 + $0x20] sm:$0xf]
    %v466 = vld [vmem:[#allocation7 + $0x24] sm:$0xff]
    %v467 = vld [vmem:[#allocation7 + $0x2c] sm:$0xf]
    %v468 = vld [vmem:[#allocation7 + $0x30] sm:$0xff]
    %v469 = vld [vmem:[#allocation7 + $0x38] sm:$0xf]
    %v470 = vld [vmem:[#allocation7 + $0x3c] sm:$0xff]
    %v471 = vld [vmem:[#allocation7 + $0x44] sm:$0xf]
    %v472 = vld [vmem:[#allocation7 + $0x48] sm:$0xff]
    %v473 = vld [vmem:[#allocation7 + $0x50] sm:$0xf]
    %v474 = vld [vmem:[#allocation7 + $0x54] sm:$0xff]
    %v475 = vld [vmem:[#allocation7 + $0x5c] sm:$0xf]
    %v476 = vld [vmem:[#allocation7 + $0x60] sm:$0xff]
    %v477 = vld [vmem:[#allocation7 + $0x68] sm:$0xf]
    %v478 = vld [vmem:[#allocation7 + $0x6c] sm:$0xff]
    %v479 = vld [vmem:[#allocation7 + $0x74] sm:$0xf]
    %v480 = vld [vmem:[#allocation7 + $0x78] sm:$0xff]
    %v481 = vld [vmem:[#allocation7 + $0x80] sm:$0xf]
    %v482 = vld [vmem:[#allocation7 + $0x84] sm:$0xff]
    %v483 = vld [vmem:[#allocation7 + $0x8c] sm:$0xf]
    %v484 = vld [vmem:[#allocation7 + $0x90] sm:$0xff]
    %v485 = vld [vmem:[#allocation7 + $0x98] sm:$0xf]
    %v486 = vld [vmem:[#allocation7 + $0x9c] sm:$0xff]
    %v487 = vld [vmem:[#allocation7 + $0xa4] sm:$0xf]
    %v488 = vld [vmem:[#allocation7 + $0xa8] sm:$0xff]
    %v489 = vld [vmem:[#allocation7 + $0xb0] sm:$0xf]
    %v490 = vld [vmem:[#allocation7 + $0xb4] sm:$0xff]
    %v491 = vld [vmem:[#allocation7 + $0xbc] sm:$0xf]
    %v492 = vlaneseq
    %v493 = vshrl.u32 %v492, 7
    %v494 = vsub.s32 1, %v493
    %v495 = vrot.slane %v189, %v494
    %v496 = vlaneseq
    %v497 = vshrl.u32 %v496, 7
    %v498 = vsub.s32 3, %v497
    %v499 = vrot.slane %v189, %v498
    %v500 = vlaneseq
    %v501 = vshrl.u32 %v500, 7
    %v502 = vsub.s32 5, %v501
    %v503 = vrot.slane %v189, %v502
    %v507 = vlaneseq
    %v508 = vshrl.u32 %v507, 7
    %v509 = vsub.s32 1, %v508
    %v510 = vrot.slane %v495, %v509
    %v511 = vlaneseq
    %v512 = vshrl.u32 %v511, 7
    %v513 = vsub.s32 1, %v512
    %v514 = vrot.slane %v499, %v513
    %v515 = vlaneseq
    %v516 = vshrl.u32 %v515, 7
    %v517 = vsub.s32 1, %v516
    %v518 = vrot.slane %v503, %v517
    %v551 = vunpack.c.l.b16 %v460
    %v552 = vunpack.c.h.b16 %v460
    %v553 = vunpack.c.l.b16 %v461
    %v554 = vunpack.c.l.b16 %v462
    %v555 = vunpack.c.h.b16 %v462
    %v556 = vunpack.c.l.b16 %v463
    %v557 = vunpack.c.l.b16 %v464
    %v558 = vunpack.c.h.b16 %v464
    %v559 = vunpack.c.l.b16 %v465
    %v560 = vunpack.c.l.b16 %v466
    %v561 = vunpack.c.h.b16 %v466
    %v562 = vunpack.c.l.b16 %v467
    %v563 = vunpack.c.l.b16 %v468
    %v564 = vunpack.c.h.b16 %v468
    %v565 = vunpack.c.l.b16 %v469
    %v566 = vunpack.c.l.b16 %v470
    %v567 = vunpack.c.h.b16 %v470
    %v568 = vunpack.c.l.b16 %v471
    %v569 = vunpack.c.l.b16 %v472
    %v570 = vunpack.c.h.b16 %v472
    %v571 = vunpack.c.l.b16 %v473
    %v572 = vunpack.c.l.b16 %v474
    %v573 = vunpack.c.h.b16 %v474
    %v574 = vunpack.c.l.b16 %v475
    %v575 = vunpack.c.l.b16 %v476
    %v576 = vunpack.c.h.b16 %v476
    %v577 = vunpack.c.l.b16 %v477
    %v578 = vunpack.c.l.b16 %v478
    %v579 = vunpack.c.h.b16 %v478
    %v580 = vunpack.c.l.b16 %v479
    %v581 = vunpack.c.l.b16 %v480
    %v582 = vunpack.c.h.b16 %v480
    %v583 = vunpack.c.l.b16 %v481
    %v584 = vunpack.c.l.b16 %v482
    %v585 = vunpack.c.h.b16 %v482
    %v586 = vunpack.c.l.b16 %v483
    %v587 = vunpack.c.l.b16 %v484
    %v588 = vunpack.c.h.b16 %v484
    %v589 = vunpack.c.l.b16 %v485
    %v590 = vunpack.c.l.b16 %v486
    %v591 = vunpack.c.h.b16 %v486
    %v592 = vunpack.c.l.b16 %v487
    %v593 = vunpack.c.l.b16 %v488
    %v594 = vunpack.c.h.b16 %v488
    %v595 = vunpack.c.l.b16 %v489
    %v596 = vunpack.c.l.b16 %v490
    %v597 = vunpack.c.h.b16 %v490
    %v598 = vunpack.c.l.b16 %v491
    %v599 = vpack.c.b16 %v554, %v551
    %v600 = vpack.c.b16 %v555, %v552
    %v601 = vpack.c.b16 %v556, %v553
    %v602 = vpack.c.b16 %v560, %v557
    %v603 = vpack.c.b16 %v561, %v558
    %v604 = vpack.c.b16 %v562, %v559
    %v605 = vpack.c.b16 %v566, %v563
    %v606 = vpack.c.b16 %v567, %v564
    %v607 = vpack.c.b16 %v568, %v565
    %v608 = vpack.c.b16 %v572, %v569
    %v609 = vpack.c.b16 %v573, %v570
    %v610 = vpack.c.b16 %v574, %v571
    %v611 = vpack.c.b16 %v578, %v575
    %v612 = vpack.c.b16 %v579, %v576
    %v613 = vpack.c.b16 %v580, %v577
    %v614 = vpack.c.b16 %v584, %v581
    %v615 = vpack.c.b16 %v585, %v582
    %v616 = vpack.c.b16 %v586, %v583
    %v617 = vpack.c.b16 %v590, %v587
    %v618 = vpack.c.b16 %v591, %v588
    %v619 = vpack.c.b16 %v592, %v589
    %v620 = vpack.c.b16 %v596, %v593
    %v621 = vpack.c.b16 %v597, %v594
    %v622 = vpack.c.b16 %v598, %v595
    %647 = vmatprep.subr.bf16.mxu0 %v600
    %648 = vmatpush1.bf16.msra.mxu0 %v599
    %649 = vmatprep.subr.bf16.mxu0 %v603
    %650 = vmatpush1.bf16.msra.mxu0 %v602
    %651 = vmatprep.subr.bf16.mxu0 %v606
    %652 = vmatpush1.bf16.msra.mxu0 %v605
    %653 = vmatprep.subr.bf16.mxu0 %v609
    %654 = vmatpush1.bf16.msra.mxu0 %v608
    %655 = vmatprep.subr.bf16.mxu0 %v612
    %656 = vmatpush1.bf16.msra.mxu0 %v611
    %657 = vmatprep.subr.bf16.mxu0 %v615
    %658 = vmatpush1.bf16.msra.mxu0 %v614
    %659 = vmatprep.subr.bf16.mxu0 %v618
    %660 = vmatpush1.bf16.msra.mxu0 %v617
    %661 = vmatprep.subr.bf16.mxu0 %v621
    %662 = vmatpush1.bf16.msra.mxu0 %v620
    %663 = vmatprep.subr.bf16.mxu0 0
    %664 = vmatpush1.bf16.msra.mxu0 0
    %665 = vmatprep.subr.bf16.mxu0 0
    %666 = vmatpush1.bf16.msra.mxu0 0
    %667 = vmatprep.subr.bf16.mxu0 0
    %668 = vmatpush1.bf16.msra.mxu0 0
    %669 = vmatprep.subr.bf16.mxu0 0
    %670 = vmatpush1.bf16.msra.mxu0 0
    %671 = vmatprep.subr.bf16.mxu0 0
    %672 = vmatpush1.bf16.msra.mxu0 0
    %673 = vmatprep.subr.bf16.mxu0 0
    %674 = vmatpush1.bf16.msra.mxu0 0
    %675 = vmatprep.subr.bf16.mxu0 0
    %676 = vmatpush1.bf16.msra.mxu0 0
    %677 = vmatprep.subr.bf16.mxu0 0
    %678 = vmatpush1.bf16.msra.mxu0 0
    %679 = vmatprep.mubr.bf16.mxu0 0
    %680 = vmatmul.mubr.bf16.gmra.mrb[0].mxu0 %v459
    %v681 = vpop.f32.mrb[0].mxu0
    %v682 = vadd.f32 %v510, %v681
    %v683 = vpop.f32.mrb[0].mxu0
    %v684 = vadd.f32 %v514, %v683
    %v685 = vpop.f32.mrb[0].mxu0
    %v686 = vpop.f32.mrb[0].mxu0
    %687 = vdwg.mxu0
    %688 = vmatprep.subr.bf16.mxu0 0
    %689 = vmatpush1.bf16.msra.mxu0 %v601
    %690 = vmatprep.subr.bf16.mxu0 0
    %691 = vmatpush1.bf16.msra.mxu0 %v604
    %692 = vmatprep.subr.bf16.mxu0 0
    %693 = vmatpush1.bf16.msra.mxu0 %v607
    %694 = vmatprep.subr.bf16.mxu0 0
    %695 = vmatpush1.bf16.msra.mxu0 %v610
    %696 = vmatprep.subr.bf16.mxu0 0
    %697 = vmatpush1.bf16.msra.mxu0 %v613
    %698 = vmatprep.subr.bf16.mxu0 0
    %699 = vmatpush1.bf16.msra.mxu0 %v616
    %700 = vmatprep.subr.bf16.mxu0 0
    %701 = vmatpush1.bf16.msra.mxu0 %v619
    %702 = vmatprep.subr.bf16.mxu0 0
    %703 = vmatpush1.bf16.msra.mxu0 %v622
    %704 = vmatprep.subr.bf16.mxu0 0
    %705 = vmatpush1.bf16.msra.mxu0 0
    %706 = vmatprep.subr.bf16.mxu0 0
    %707 = vmatpush1.bf16.msra.mxu0 0
    %708 = vmatprep.subr.bf16.mxu0 0
    %709 = vmatpush1.bf16.msra.mxu0 0
    %710 = vmatprep.subr.bf16.mxu0 0
    %711 = vmatpush1.bf16.msra.mxu0 0
    %712 = vmatprep.subr.bf16.mxu0 0
    %713 = vmatpush1.bf16.msra.mxu0 0
    %714 = vmatprep.subr.bf16.mxu0 0
    %715 = vmatpush1.bf16.msra.mxu0 0
    %716 = vmatprep.subr.bf16.mxu0 0
    %717 = vmatpush1.bf16.msra.mxu0 0
    %718 = vmatprep.subr.bf16.mxu0 0
    %719 = vmatpush1.bf16.msra.mxu0 0
    %720 = vmatprep.mubr.bf16.mxu0 0
    %721 = vmatmul.mubr.bf16.gmra.mrb[0].mxu0 %v459
    %v722 = vpop.f32.mrb[0].mxu0
    %v723 = vadd.f32 %v518, %v722
    %v724 = vpop.f32.mrb[0].mxu0
    %v725 = vpop.f32.mrb[0].mxu0
    %v726 = vpop.f32.mrb[0].mxu0
    %727 = vdwg.mxu0
    %v728 = vadd.f32 %v413, %v682
    %v729 = vxor.u32 %v728, 2147483648
    %v730 = vmul.f32 %v729, 1.442695
    %v731 = vpow.pop %v730
    %v732 = vadd.f32 %v731, 1.0
    %v733 = vrcp.pop %v732
    %v734 = vmul.f32 1.0, %v733
    %v735 = vadd.f32 %v415, %v684
    %v736 = vxor.u32 %v735, 2147483648
    %v737 = vmul.f32 %v736, 1.442695
    %v738 = vpow.pop %v737
    %v739 = vadd.f32 %v738, 1.0
    %v740 = vrcp.pop %v739
    %v741 = vmul.f32 1.0, %v740
    %v742 = vmul.f32 %v734, %v723
    %v743 = vadd.f32 %v454, %v742
    %v744 = vtanh.pop %v743
    %v745 = vsub.f32 1.0, %v741
    %v746 = vmul.f32 %v745, %v744
    %v747 = vmul.f32 %v741, %v188
    %v748 = vadd.f32 %v746, %v747
    %749 = vst [vmem:[%s7] sm:$0xff] %v748
    %v750 = vpack.c.bf16 %v748, %v748
    %751 = vst [vmem:[#allocation2] sm:$0xf] %v750
    %v752 = vld [vmem:[#allocation2] sm:$0xf]
    %s753 = scalar_lea.vmem %s3, 8
    %v754 = vld [vmem:[%s753] sm:$0xff]
    %s755 = scalar_lea.vmem %s6, 6
    %v756 = vld [vmem:[%s755] sm:$0x3f]
    %s757 = scalar_lea.vmem [#allocation5], 192
    %v758 = vld [vmem:[%s757] sm:$0xff]
    %v759 = vld [vmem:[%s757 + $0x8] sm:$0xf]
    %v760 = vld [vmem:[%s757 + $0xc] sm:$0xff]
    %v761 = vld [vmem:[%s757 + $0x14] sm:$0xf]
    %v762 = vld [vmem:[%s757 + $0x18] sm:$0xff]
    %v763 = vld [vmem:[%s757 + $0x20] sm:$0xf]
    %v764 = vld [vmem:[%s757 + $0x24] sm:$0xff]
    %v765 = vld [vmem:[%s757 + $0x2c] sm:$0xf]
    %v766 = vld [vmem:[%s757 + $0x30] sm:$0xff]
    %v767 = vld [vmem:[%s757 + $0x38] sm:$0xf]
    %v768 = vld [vmem:[%s757 + $0x3c] sm:$0xff]
    %v769 = vld [vmem:[%s757 + $0x44] sm:$0xf]
    %v770 = vld [vmem:[%s757 + $0x48] sm:$0xff]
    %v771 = vld [vmem:[%s757 + $0x50] sm:$0xf]
    %v772 = vld [vmem:[%s757 + $0x54] sm:$0xff]
    %v773 = vld [vmem:[%s757 + $0x5c] sm:$0xf]
    %v774 = vld [vmem:[%s757 + $0x60] sm:$0xff]
    %v775 = vld [vmem:[%s757 + $0x68] sm:$0xf]
    %v776 = vld [vmem:[%s757 + $0x6c] sm:$0xff]
    %v777 = vld [vmem:[%s757 + $0x74] sm:$0xf]
    %v778 = vld [vmem:[%s757 + $0x78] sm:$0xff]
    %v779 = vld [vmem:[%s757 + $0x80] sm:$0xf]
    %v780 = vld [vmem:[%s757 + $0x84] sm:$0xff]
    %v781 = vld [vmem:[%s757 + $0x8c] sm:$0xf]
    %v782 = vld [vmem:[%s757 + $0x90] sm:$0xff]
    %v783 = vld [vmem:[%s757 + $0x98] sm:$0xf]
    %v784 = vld [vmem:[%s757 + $0x9c] sm:$0xff]
    %v785 = vld [vmem:[%s757 + $0xa4] sm:$0xf]
    %v786 = vld [vmem:[%s757 + $0xa8] sm:$0xff]
    %v787 = vld [vmem:[%s757 + $0xb0] sm:$0xf]
    %v788 = vld [vmem:[%s757 + $0xb4] sm:$0xff]
    %v789 = vld [vmem:[%s757 + $0xbc] sm:$0xf]
    %v791 = vlaneseq
    %v792 = vshrl.u32 %v791, 7
    %v793 = vsub.s32 0, %v792
    %v794 = vrot.slane %v756, %v793
    %v795 = vlaneseq
    %v796 = vshrl.u32 %v795, 7
    %v797 = vsub.s32 2, %v796
    %v798 = vrot.slane %v756, %v797
    %v799 = vlaneseq
    %v800 = vshrl.u32 %v799, 7
    %v801 = vsub.s32 4, %v800
    %v802 = vrot.slane %v756, %v801
    %v806 = vlaneseq
    %v807 = vshrl.u32 %v806, 7
    %v808 = vsub.s32 0, %v807
    %v809 = vrot.slane %v794, %v808
    %v810 = vlaneseq
    %v811 = vshrl.u32 %v810, 7
    %v812 = vsub.s32 0, %v811
    %v813 = vrot.slane %v798, %v812
    %v814 = vlaneseq
    %v815 = vshrl.u32 %v814, 7
    %v816 = vsub.s32 0, %v815
    %v817 = vrot.slane %v802, %v816
    %v850 = vunpack.c.l.b16 %v758
    %v851 = vunpack.c.h.b16 %v758
    %v852 = vunpack.c.l.b16 %v759
    %v853 = vunpack.c.l.b16 %v760
    %v854 = vunpack.c.h.b16 %v760
    %v855 = vunpack.c.l.b16 %v761
    %v856 = vunpack.c.l.b16 %v762
    %v857 = vunpack.c.h.b16 %v762
    %v858 = vunpack.c.l.b16 %v763
    %v859 = vunpack.c.l.b16 %v764
    %v860 = vunpack.c.h.b16 %v764
    %v861 = vunpack.c.l.b16 %v765
    %v862 = vunpack.c.l.b16 %v766
    %v863 = vunpack.c.h.b16 %v766
    %v864 = vunpack.c.l.b16 %v767
    %v865 = vunpack.c.l.b16 %v768
    %v866 = vunpack.c.h.b16 %v768
    %v867 = vunpack.c.l.b16 %v769
    %v868 = vunpack.c.l.b16 %v770
    %v869 = vunpack.c.h.b16 %v770
    %v870 = vunpack.c.l.b16 %v771
    %v871 = vunpack.c.l.b16 %v772
    %v872 = vunpack.c.h.b16 %v772
    %v873 = vunpack.c.l.b16 %v773
    %v874 = vunpack.c.l.b16 %v774
    %v875 = vunpack.c.h.b16 %v774
    %v876 = vunpack.c.l.b16 %v775
    %v877 = vunpack.c.l.b16 %v776
    %v878 = vunpack.c.h.b16 %v776
    %v879 = vunpack.c.l.b16 %v777
    %v880 = vunpack.c.l.b16 %v778
    %v881 = vunpack.c.h.b16 %v778
    %v882 = vunpack.c.l.b16 %v779
    %v883 = vunpack.c.l.b16 %v780
    %v884 = vunpack.c.h.b16 %v780
    %v885 = vunpack.c.l.b16 %v781
    %v886 = vunpack.c.l.b16 %v782
    %v887 = vunpack.c.h.b16 %v782
    %v888 = vunpack.c.l.b16 %v783
    %v889 = vunpack.c.l.b16 %v784
    %v890 = vunpack.c.h.b16 %v784
    %v891 = vunpack.c.l.b16 %v785
    %v892 = vunpack.c.l.b16 %v786
    %v893 = vunpack.c.h.b16 %v786
    %v894 = vunpack.c.l.b16 %v787
    %v895 = vunpack.c.l.b16 %v788
    %v896 = vunpack.c.h.b16 %v788
    %v897 = vunpack.c.l.b16 %v789
    %v898 = vpack.c.b16 %v853, %v850
    %v899 = vpack.c.b16 %v854, %v851
    %v900 = vpack.c.b16 %v855, %v852
    %v901 = vpack.c.b16 %v859, %v856
    %v902 = vpack.c.b16 %v860, %v857
    %v903 = vpack.c.b16 %v861, %v858
    %v904 = vpack.c.b16 %v865, %v862
    %v905 = vpack.c.b16 %v866, %v863
    %v906 = vpack.c.b16 %v867, %v864
    %v907 = vpack.c.b16 %v871, %v868
    %v908 = vpack.c.b16 %v872, %v869
    %v909 = vpack.c.b16 %v873, %v870
    %v910 = vpack.c.b16 %v877, %v874
    %v911 = vpack.c.b16 %v878, %v875
    %v912 = vpack.c.b16 %v879, %v876
    %v913 = vpack.c.b16 %v883, %v880
    %v914 = vpack.c.b16 %v884, %v881
    %v915 = vpack.c.b16 %v885, %v882
    %v916 = vpack.c.b16 %v889, %v886
    %v917 = vpack.c.b16 %v890, %v887
    %v918 = vpack.c.b16 %v891, %v888
    %v919 = vpack.c.b16 %v895, %v892
    %v920 = vpack.c.b16 %v896, %v893
    %v921 = vpack.c.b16 %v897, %v894
    %946 = vmatprep.subr.bf16.mxu0 %v899
    %947 = vmatpush1.bf16.msra.mxu0 %v898
    %948 = vmatprep.subr.bf16.mxu0 %v902
    %949 = vmatpush1.bf16.msra.mxu0 %v901
    %950 = vmatprep.subr.bf16.mxu0 %v905
    %951 = vmatpush1.bf16.msra.mxu0 %v904
    %952 = vmatprep.subr.bf16.mxu0 %v908
    %953 = vmatpush1.bf16.msra.mxu0 %v907
    %954 = vmatprep.subr.bf16.mxu0 %v911
    %955 = vmatpush1.bf16.msra.mxu0 %v910
    %956 = vmatprep.subr.bf16.mxu0 %v914
    %957 = vmatpush1.bf16.msra.mxu0 %v913
    %958 = vmatprep.subr.bf16.mxu0 %v917
    %959 = vmatpush1.bf16.msra.mxu0 %v916
    %960 = vmatprep.subr.bf16.mxu0 %v920
    %961 = vmatpush1.bf16.msra.mxu0 %v919
    %962 = vmatprep.subr.bf16.mxu0 0
    %963 = vmatpush1.bf16.msra.mxu0 0
    %964 = vmatprep.subr.bf16.mxu0 0
    %965 = vmatpush1.bf16.msra.mxu0 0
    %966 = vmatprep.subr.bf16.mxu0 0
    %967 = vmatpush1.bf16.msra.mxu0 0
    %968 = vmatprep.subr.bf16.mxu0 0
    %969 = vmatpush1.bf16.msra.mxu0 0
    %970 = vmatprep.subr.bf16.mxu0 0
    %971 = vmatpush1.bf16.msra.mxu0 0
    %972 = vmatprep.subr.bf16.mxu0 0
    %973 = vmatpush1.bf16.msra.mxu0 0
    %974 = vmatprep.subr.bf16.mxu0 0
    %975 = vmatpush1.bf16.msra.mxu0 0
    %976 = vmatprep.subr.bf16.mxu0 0
    %977 = vmatpush1.bf16.msra.mxu0 0
    %978 = vmatprep.mubr.bf16.mxu0 0
    %979 = vmatmul.mubr.bf16.gmra.mrb[0].mxu0 %v752
    %v980 = vpop.f32.mrb[0].mxu0
    %v981 = vadd.f32 %v809, %v980
    %v982 = vpop.f32.mrb[0].mxu0
    %v983 = vadd.f32 %v813, %v982
    %v984 = vpop.f32.mrb[0].mxu0
    %v985 = vpop.f32.mrb[0].mxu0
    %986 = vdwg.mxu0
    %987 = vmatprep.subr.bf16.mxu0 0
    %988 = vmatpush1.bf16.msra.mxu0 %v900
    %989 = vmatprep.subr.bf16.mxu0 0
    %990 = vmatpush1.bf16.msra.mxu0 %v903
    %991 = vmatprep.subr.bf16.mxu0 0
    %992 = vmatpush1.bf16.msra.mxu0 %v906
    %993 = vmatprep.subr.bf16.mxu0 0
    %994 = vmatpush1.bf16.msra.mxu0 %v909
    %995 = vmatprep.subr.bf16.mxu0 0
    %996 = vmatpush1.bf16.msra.mxu0 %v912
    %997 = vmatprep.subr.bf16.mxu0 0
    %998 = vmatpush1.bf16.msra.mxu0 %v915
    %999 = vmatprep.subr.bf16.mxu0 0
    %1000 = vmatpush1.bf16.msra.mxu0 %v918
    %1001 = vmatprep.subr.bf16.mxu0 0
    %1002 = vmatpush1.bf16.msra.mxu0 %v921
    %1003 = vmatprep.subr.bf16.mxu0 0
    %1004 = vmatpush1.bf16.msra.mxu0 0
    %1005 = vmatprep.subr.bf16.mxu0 0
    %1006 = vmatpush1.bf16.msra.mxu0 0
    %1007 = vmatprep.subr.bf16.mxu0 0
    %1008 = vmatpush1.bf16.msra.mxu0 0
    %1009 = vmatprep.subr.bf16.mxu0 0
    %1010 = vmatpush1.bf16.msra.mxu0 0
    %1011 = vmatprep.subr.bf16.mxu0 0
    %1012 = vmatpush1.bf16.msra.mxu0 0
    %1013 = vmatprep.subr.bf16.mxu0 0
    %1014 = vmatpush1.bf16.msra.mxu0 0
    %1015 = vmatprep.subr.bf16.mxu0 0
    %1016 = vmatpush1.bf16.msra.mxu0 0
    %1017 = vmatprep.subr.bf16.mxu0 0
    %1018 = vmatpush1.bf16.msra.mxu0 0
    %1019 = vmatprep.mubr.bf16.mxu0 0
    %1020 = vmatmul.mubr.bf16.gmra.mrb[0].mxu0 %v752
    %v1021 = vpop.f32.mrb[0].mxu0
    %v1022 = vadd.f32 %v817, %v1021
    %v1023 = vpop.f32.mrb[0].mxu0
    %v1024 = vpop.f32.mrb[0].mxu0
    %v1025 = vpop.f32.mrb[0].mxu0
    %1026 = vdwg.mxu0
    %v1027 = vpack.c.bf16 %v754, %v754
    %s1028 = scalar_lea.vmem [#allocation7], 192
    %v1029 = vld [vmem:[%s1028] sm:$0xff]
    %v1030 = vld [vmem:[%s1028 + $0x8] sm:$0xf]
    %v1031 = vld [vmem:[%s1028 + $0xc] sm:$0xff]
    %v1032 = vld [vmem:[%s1028 + $0x14] sm:$0xf]
    %v1033 = vld [vmem:[%s1028 + $0x18] sm:$0xff]
    %v1034 = vld [vmem:[%s1028 + $0x20] sm:$0xf]
    %v1035 = vld [vmem:[%s1028 + $0x24] sm:$0xff]
    %v1036 = vld [vmem:[%s1028 + $0x2c] sm:$0xf]
    %v1037 = vld [vmem:[%s1028 + $0x30] sm:$0xff]
    %v1038 = vld [vmem:[%s1028 + $0x38] sm:$0xf]
    %v1039 = vld [vmem:[%s1028 + $0x3c] sm:$0xff]
    %v1040 = vld [vmem:[%s1028 + $0x44] sm:$0xf]
    %v1041 = vld [vmem:[%s1028 + $0x48] sm:$0xff]
    %v1042 = vld [vmem:[%s1028 + $0x50] sm:$0xf]
    %v1043 = vld [vmem:[%s1028 + $0x54] sm:$0xff]
    %v1044 = vld [vmem:[%s1028 + $0x5c] sm:$0xf]
    %v1045 = vld [vmem:[%s1028 + $0x60] sm:$0xff]
    %v1046 = vld [vmem:[%s1028 + $0x68] sm:$0xf]
    %v1047 = vld [vmem:[%s1028 + $0x6c] sm:$0xff]
    %v1048 = vld [vmem:[%s1028 + $0x74] sm:$0xf]
    %v1049 = vld [vmem:[%s1028 + $0x78] sm:$0xff]
    %v1050 = vld [vmem:[%s1028 + $0x80] sm:$0xf]
    %v1051 = vld [vmem:[%s1028 + $0x84] sm:$0xff]
    %v1052 = vld [vmem:[%s1028 + $0x8c] sm:$0xf]
    %v1053 = vld [vmem:[%s1028 + $0x90] sm:$0xff]
    %v1054 = vld [vmem:[%s1028 + $0x98] sm:$0xf]
    %v1055 = vld [vmem:[%s1028 + $0x9c] sm:$0xff]
    %v1056 = vld [vmem:[%s1028 + $0xa4] sm:$0xf]
    %v1057 = vld [vmem:[%s1028 + $0xa8] sm:$0xff]
    %v1058 = vld [vmem:[%s1028 + $0xb0] sm:$0xf]
    %v1059 = vld [vmem:[%s1028 + $0xb4] sm:$0xff]
    %v1060 = vld [vmem:[%s1028 + $0xbc] sm:$0xf]
    %v1061 = vlaneseq
    %v1062 = vshrl.u32 %v1061, 7
    %v1063 = vsub.s32 1, %v1062
    %v1064 = vrot.slane %v756, %v1063
    %v1065 = vlaneseq
    %v1066 = vshrl.u32 %v1065, 7
    %v1067 = vsub.s32 3, %v1066
    %v1068 = vrot.slane %v756, %v1067
    %v1069 = vlaneseq
    %v1070 = vshrl.u32 %v1069, 7
    %v1071 = vsub.s32 5, %v1070
    %v1072 = vrot.slane %v756, %v1071
    %v1076 = vlaneseq
    %v1077 = vshrl.u32 %v1076, 7
    %v1078 = vsub.s32 1, %v1077
    %v1079 = vrot.slane %v1064, %v1078
    %v1080 = vlaneseq
    %v1081 = vshrl.u32 %v1080, 7
    %v1082 = vsub.s32 1, %v1081
    %v1083 = vrot.slane %v1068, %v1082
    %v1084 = vlaneseq
    %v1085 = vshrl.u32 %v1084, 7
    %v1086 = vsub.s32 1, %v1085
    %v1087 = vrot.slane %v1072, %v1086
    %v1120 = vunpack.c.l.b16 %v1029
    %v1121 = vunpack.c.h.b16 %v1029
    %v1122 = vunpack.c.l.b16 %v1030
    %v1123 = vunpack.c.l.b16 %v1031
    %v1124 = vunpack.c.h.b16 %v1031
    %v1125 = vunpack.c.l.b16 %v1032
    %v1126 = vunpack.c.l.b16 %v1033
    %v1127 = vunpack.c.h.b16 %v1033
    %v1128 = vunpack.c.l.b16 %v1034
    %v1129 = vunpack.c.l.b16 %v1035
    %v1130 = vunpack.c.h.b16 %v1035
    %v1131 = vunpack.c.l.b16 %v1036
    %v1132 = vunpack.c.l.b16 %v1037
    %v1133 = vunpack.c.h.b16 %v1037
    %v1134 = vunpack.c.l.b16 %v1038
    %v1135 = vunpack.c.l.b16 %v1039
    %v1136 = vunpack.c.h.b16 %v1039
    %v1137 = vunpack.c.l.b16 %v1040
    %v1138 = vunpack.c.l.b16 %v1041
    %v1139 = vunpack.c.h.b16 %v1041
    %v1140 = vunpack.c.l.b16 %v1042
    %v1141 = vunpack.c.l.b16 %v1043
    %v1142 = vunpack.c.h.b16 %v1043
    %v1143 = vunpack.c.l.b16 %v1044
    %v1144 = vunpack.c.l.b16 %v1045
    %v1145 = vunpack.c.h.b16 %v1045
    %v1146 = vunpack.c.l.b16 %v1046
    %v1147 = vunpack.c.l.b16 %v1047
    %v1148 = vunpack.c.h.b16 %v1047
    %v1149 = vunpack.c.l.b16 %v1048
    %v1150 = vunpack.c.l.b16 %v1049
    %v1151 = vunpack.c.h.b16 %v1049
    %v1152 = vunpack.c.l.b16 %v1050
    %v1153 = vunpack.c.l.b16 %v1051
    %v1154 = vunpack.c.h.b16 %v1051
    %v1155 = vunpack.c.l.b16 %v1052
    %v1156 = vunpack.c.l.b16 %v1053
    %v1157 = vunpack.c.h.b16 %v1053
    %v1158 = vunpack.c.l.b16 %v1054
    %v1159 = vunpack.c.l.b16 %v1055
    %v1160 = vunpack.c.h.b16 %v1055
    %v1161 = vunpack.c.l.b16 %v1056
    %v1162 = vunpack.c.l.b16 %v1057
    %v1163 = vunpack.c.h.b16 %v1057
    %v1164 = vunpack.c.l.b16 %v1058
    %v1165 = vunpack.c.l.b16 %v1059
    %v1166 = vunpack.c.h.b16 %v1059
    %v1167 = vunpack.c.l.b16 %v1060
    %v1168 = vpack.c.b16 %v1123, %v1120
    %v1169 = vpack.c.b16 %v1124, %v1121
    %v1170 = vpack.c.b16 %v1125, %v1122
    %v1171 = vpack.c.b16 %v1129, %v1126
    %v1172 = vpack.c.b16 %v1130, %v1127
    %v1173 = vpack.c.b16 %v1131, %v1128
    %v1174 = vpack.c.b16 %v1135, %v1132
    %v1175 = vpack.c.b16 %v1136, %v1133
    %v1176 = vpack.c.b16 %v1137, %v1134
    %v1177 = vpack.c.b16 %v1141, %v1138
    %v1178 = vpack.c.b16 %v1142, %v1139
    %v1179 = vpack.c.b16 %v1143, %v1140
    %v1180 = vpack.c.b16 %v1147, %v1144
    %v1181 = vpack.c.b16 %v1148, %v1145
    %v1182 = vpack.c.b16 %v1149, %v1146
    %v1183 = vpack.c.b16 %v1153, %v1150
    %v1184 = vpack.c.b16 %v1154, %v1151
    %v1185 = vpack.c.b16 %v1155, %v1152
    %v1186 = vpack.c.b16 %v1159, %v1156
    %v1187 = vpack.c.b16 %v1160, %v1157
    %v1188 = vpack.c.b16 %v1161, %v1158
    %v1189 = vpack.c.b16 %v1165, %v1162
    %v1190 = vpack.c.b16 %v1166, %v1163
    %v1191 = vpack.c.b16 %v1167, %v1164
    %1216 = vmatprep.subr.bf16.mxu0 %v1169
    %1217 = vmatpush1.bf16.msra.mxu0 %v1168
    %1218 = vmatprep.subr.bf16.mxu0 %v1172
    %1219 = vmatpush1.bf16.msra.mxu0 %v1171
    %1220 = vmatprep.subr.bf16.mxu0 %v1175
    %1221 = vmatpush1.bf16.msra.mxu0 %v1174
    %1222 = vmatprep.subr.bf16.mxu0 %v1178
    %1223 = vmatpush1.bf16.msra.mxu0 %v1177
    %1224 = vmatprep.subr.bf16.mxu0 %v1181
    %1225 = vmatpush1.bf16.msra.mxu0 %v1180
    %1226 = vmatprep.subr.bf16.mxu0 %v1184
    %1227 = vmatpush1.bf16.msra.mxu0 %v1183
    %1228 = vmatprep.subr.bf16.mxu0 %v1187
    %1229 = vmatpush1.bf16.msra.mxu0 %v1186
    %1230 = vmatprep.subr.bf16.mxu0 %v1190
    %1231 = vmatpush1.bf16.msra.mxu0 %v1189
    %1232 = vmatprep.subr.bf16.mxu0 0
    %1233 = vmatpush1.bf16.msra.mxu0 0
    %1234 = vmatprep.subr.bf16.mxu0 0
    %1235 = vmatpush1.bf16.msra.mxu0 0
    %1236 = vmatprep.subr.bf16.mxu0 0
    %1237 = vmatpush1.bf16.msra.mxu0 0
    %1238 = vmatprep.subr.bf16.mxu0 0
    %1239 = vmatpush1.bf16.msra.mxu0 0
    %1240 = vmatprep.subr.bf16.mxu0 0
    %1241 = vmatpush1.bf16.msra.mxu0 0
    %1242 = vmatprep.subr.bf16.mxu0 0
    %1243 = vmatpush1.bf16.msra.mxu0 0
    %1244 = vmatprep.subr.bf16.mxu0 0
    %1245 = vmatpush1.bf16.msra.mxu0 0
    %1246 = vmatprep.subr.bf16.mxu0 0
    %1247 = vmatpush1.bf16.msra.mxu0 0
    %1248 = vmatprep.mubr.bf16.mxu0 0
    %1249 = vmatmul.mubr.bf16.gmra.mrb[0].mxu0 %v1027
    %v1250 = vpop.f32.mrb[0].mxu0
    %v1251 = vadd.f32 %v1079, %v1250
    %v1252 = vpop.f32.mrb[0].mxu0
    %v1253 = vadd.f32 %v1083, %v1252
    %v1254 = vpop.f32.mrb[0].mxu0
    %v1255 = vpop.f32.mrb[0].mxu0
    %1256 = vdwg.mxu0
    %1257 = vmatprep.subr.bf16.mxu0 0
    %1258 = vmatpush1.bf16.msra.mxu0 %v1170
    %1259 = vmatprep.subr.bf16.mxu0 0
    %1260 = vmatpush1.bf16.msra.mxu0 %v1173
    %1261 = vmatprep.subr.bf16.mxu0 0
    %1262 = vmatpush1.bf16.msra.mxu0 %v1176
    %1263 = vmatprep.subr.bf16.mxu0 0
    %1264 = vmatpush1.bf16.msra.mxu0 %v1179
    %1265 = vmatprep.subr.bf16.mxu0 0
    %1266 = vmatpush1.bf16.msra.mxu0 %v1182
    %1267 = vmatprep.subr.bf16.mxu0 0
    %1268 = vmatpush1.bf16.msra.mxu0 %v1185
    %1269 = vmatprep.subr.bf16.mxu0 0
    %1270 = vmatpush1.bf16.msra.mxu0 %v1188
    %1271 = vmatprep.subr.bf16.mxu0 0
    %1272 = vmatpush1.bf16.msra.mxu0 %v1191
    %1273 = vmatprep.subr.bf16.mxu0 0
    %1274 = vmatpush1.bf16.msra.mxu0 0
    %1275 = vmatprep.subr.bf16.mxu0 0
    %1276 = vmatpush1.bf16.msra.mxu0 0
    %1277 = vmatprep.subr.bf16.mxu0 0
    %1278 = vmatpush1.bf16.msra.mxu0 0
    %1279 = vmatprep.subr.bf16.mxu0 0
    %1280 = vmatpush1.bf16.msra.mxu0 0
    %1281 = vmatprep.subr.bf16.mxu0 0
    %1282 = vmatpush1.bf16.msra.mxu0 0
    %1283 = vmatprep.subr.bf16.mxu0 0
    %1284 = vmatpush1.bf16.msra.mxu0 0
    %1285 = vmatprep.subr.bf16.mxu0 0
    %1286 = vmatpush1.bf16.msra.mxu0 0
    %1287 = vmatprep.subr.bf16.mxu0 0
    %1288 = vmatpush1.bf16.msra.mxu0 0
    %1289 = vmatprep.mubr.bf16.mxu0 0
    %1290 = vmatmul.mubr.bf16.gmra.mrb[0].mxu0 %v1027
    %v1291 = vpop.f32.mrb[0].mxu0
    %v1292 = vadd.f32 %v1087, %v1291
    %v1293 = vpop.f32.mrb[0].mxu0
    %v1294 = vpop.f32.mrb[0].mxu0
    %v1295 = vpop.f32.mrb[0].mxu0
    %1296 = vdwg.mxu0
    %v1297 = vadd.f32 %v981, %v1251
    %v1298 = vxor.u32 %v1297, 2147483648
    %v1299 = vmul.f32 %v1298, 1.442695
    %v1300 = vpow.pop %v1299
    %v1301 = vadd.f32 %v1300, 1.0
    %v1302 = vrcp.pop %v1301
    %v1303 = vmul.f32 1.0, %v1302
    %v1304 = vadd.f32 %v983, %v1253
    %v1305 = vxor.u32 %v1304, 2147483648
    %v1306 = vmul.f32 %v1305, 1.442695
    %v1307 = vpow.pop %v1306
    %v1308 = vadd.f32 %v1307, 1.0
    %v1309 = vrcp.pop %v1308
    %v1310 = vmul.f32 1.0, %v1309
    %v1311 = vmul.f32 %v1303, %v1292
    %v1312 = vadd.f32 %v1022, %v1311
    %v1313 = vtanh.pop %v1312
    %v1314 = vsub.f32 1.0, %v1310
    %v1315 = vmul.f32 %v1314, %v1313
    %v1316 = vmul.f32 %v1310, %v754
    %v1317 = vadd.f32 %v1315, %v1316
    %s1318 = scalar_lea.vmem %s7, 8
    %1319 = vst [vmem:[%s1318] sm:$0xff] %v1317
    %v1320 = vpack.c.bf16 %v1317, %v1317
    %1321 = vst [vmem:[#allocation2] sm:$0xf] %v1320
    // Predicated region
    $region46: #{encoder_rnn_forward.1} parent=1 // pred_check
      _
    $region47: #{encoder_rnn_forward.1} parent=1 // pred_check_branch
      %1323 = sbr.rel (0) target = $region49
    $region48: #{encoder_rnn_forward.1} parent=1 // pred_region
      _
    $region49: #{encoder_rnn_forward.1} parent=1 // pred_fallthru
      _
    // Predicated region
    $region50: #{encoder_rnn_forward.1} parent=1 // pred_check
      _
    $region51: #{encoder_rnn_forward.1} parent=1 // pred_check_branch
      %1325 = sbr.rel (0) target = $region53
    $region52: #{encoder_rnn_forward.1} parent=1 // pred_region
      _
    $region53: #{encoder_rnn_forward.1} parent=1 // pred_fallthru
      _
    %1326 = vsyncpa [#allocation4], 1
    %1327 = vsyncpa [#allocation6], 1

</llo_original>
